<compile_context>
chip_gen: v7x
topology: tpu7x:2x2x1
jax: 0.10.0
libtpu: 0.0.40
codegen_flags: <defaults>
</compile_context>

<pallas_src>
import jax
import jax.numpy as jnp
from jax.experimental import pallas as pl
from jax.experimental.pallas import tpu as pltpu

# Model dims (small, consistent with the forward pass: conv expects 64 in-ch).
N_BATCH = 2
C_IN = 64
H = W = 32
KSIZE = 16
STRIDE = 16
PAD = 16
C0 = 128          # conv   : 64  -> 128
C1 = 64           # conv1  : 128 -> 64
C2 = 32           # conv2  : 64  -> 32
C3 = 16           # conv3  : 32  -> 16

TK = 4096         # K-tile; K = 16*16*64 = 16384 -> 4 grid steps


def fused_kernel(patches_ref, w0_ref, b0_ref, w1_ref, b1_ref,
                 w23_ref, b23_ref, out_ref, acc_ref):
    """Accumulate the big conv matmul over the K grid axis; on the last step
    apply bias+ReLU and run the fused 1x1-conv chain (conv2+conv3 pre-folded)."""
    k = pl.program_id(0)

    @pl.when(k == 0)
    def _():
        acc_ref[...] = jnp.zeros_like(acc_ref)

    # bf16 x bf16 -> f32 accumulation on the MXU.
    acc_ref[...] += jnp.dot(patches_ref[...], w0_ref[...],
                            preferred_element_type=jnp.float32)

    @pl.when(k == pl.num_programs(0) - 1)
    def _():
        # v1 = relu(conv(x))
        v1 = jnp.maximum(acc_ref[...] + b0_ref[...], 0.0)
        # v2 = relu(conv1(v1))
        v2 = jnp.maximum(
            jnp.dot(v1, w1_ref[...], preferred_element_type=jnp.float32)
            + b1_ref[...], 0.0)
        # v4 = relu(conv3(conv2(v2)))  -- conv2 has no ReLU, so it folds into
        # a single matmul with precomputed w23 / b23.
        v4 = jnp.maximum(
            jnp.dot(v2, w23_ref[...], preferred_element_type=jnp.float32)
            + b23_ref[...], 0.0)
        out_ref[...] = v4.astype(out_ref.dtype)


def prepare_params(params):
    """One-time weight prep (hoisted out of the per-forward path)."""
    w0, b0, w1, b1, w2, b2, w3, b3 = params
    k_dim = KSIZE * KSIZE * C_IN

    # First conv: (cout, cin, kh, kw) -> (kh, kw, cin, cout) -> (K, C0), bf16.
    w0_mat = (jnp.transpose(w0, (2, 3, 1, 0))
              .reshape(k_dim, C0).astype(jnp.bfloat16))
    # 1x1 convs -> (cin, cout) matmul weights (kept in f32, they are tiny).
    w1_mat = jnp.transpose(w1[:, :, 0, 0], (1, 0))          # (128, 64)
    w2_mat = jnp.transpose(w2[:, :, 0, 0], (1, 0))          # (64, 32)
    w3_mat = jnp.transpose(w3[:, :, 0, 0], (1, 0))          # (32, 16)

    # Fold conv2 + conv3 (no ReLU in between).
    w23 = w2_mat @ w3_mat                                    # (64, 16)
    b23 = b2 @ w3_mat + b3                                   # (16,)

    # Constant output row for the 12 pure-zero-padding tiles per image.
    v1b = jnp.maximum(b0, 0.0)
    v2b = jnp.maximum(v1b @ w1_mat + b1, 0.0)
    border_row = jnp.maximum(v2b @ w23 + b23, 0.0)           # (16,)

    return dict(
        w0_mat=w0_mat,
        b0=b0.reshape(1, C0),
        w1=w1_mat,
        b1=b1.reshape(1, C1),
        w23=w23,
        b23=b23.reshape(1, C3),
        border=border_row,
    )


def model_forward(x_nchw, pp):
    n, c, h, w = x_nchw.shape
    assert c == C_IN
    # Interior-tile shortcut requires H = W = 2*K and PAD = K (true here).
    assert h == 2 * KSIZE and w == 2 * KSIZE and PAD == KSIZE and STRIDE == KSIZE

    ho = (h + 2 * PAD - KSIZE) // STRIDE + 1                 # 4
    wo = (w + 2 * PAD - KSIZE) // STRIDE + 1                 # 4

    # im2col for the interior 2x2 tiles only (exact non-overlapping tiling of
    # the unpadded input; no zero-padded array is materialized).
    x_nhwc = jnp.transpose(x_nchw, (0, 2, 3, 1))             # (N, H, W, C)
    patches = x_nhwc.reshape(n, 2, KSIZE, 2, KSIZE, c)
    patches = patches.transpose(0, 1, 3, 2, 4, 5)            # (N,2,2,kh,kw,C)
    patches = patches.reshape(n * 4, KSIZE * KSIZE * c)      # (M, K)
    patches = patches.astype(jnp.bfloat16)

    m_rows = n * 4
    k_dim = KSIZE * KSIZE * c
    assert k_dim % TK == 0
    grid = (k_dim // TK,)

    out_int = pl.pallas_call(
        fused_kernel,
        out_shape=jax.ShapeDtypeStruct((m_rows, C3), jnp.float32),
        grid_spec=pltpu.PrefetchScalarGridSpec(
            num_scalar_prefetch=0,
            grid=grid,
            in_specs=[
                pl.BlockSpec((m_rows, TK), lambda k: (0, k)),   # patches (bf16)
                pl.BlockSpec((TK, C0), lambda k: (k, 0)),       # w0 (bf16)
                pl.BlockSpec((1, C0), lambda k: (0, 0)),        # b0
                pl.BlockSpec((C0, C1), lambda k: (0, 0)),       # w1
                pl.BlockSpec((1, C1), lambda k: (0, 0)),        # b1
                pl.BlockSpec((C1, C3), lambda k: (0, 0)),       # w23 (folded)
                pl.BlockSpec((1, C3), lambda k: (0, 0)),        # b23 (folded)
            ],
            out_specs=pl.BlockSpec((m_rows, C3), lambda k: (0, 0)),
            scratch_shapes=[pltpu.VMEM((m_rows, C0), jnp.float32)],
        ),
        compiler_params=pltpu.CompilerParams(
            dimension_semantics=("arbitrary",)),
    )(patches, pp["w0_mat"], pp["b0"], pp["w1"], pp["b1"],
      pp["w23"], pp["b23"])

    # Assemble full (N, Ho, Wo, 16): constant border rows + interior tiles.
    out_int = out_int.reshape(n, 2, 2, C3)
    out_full = jnp.broadcast_to(pp["border"], (n, ho, wo, C3))
    out_full = out_full.at[:, 1:3, 1:3, :].set(out_int)
    return out_full.transpose(0, 3, 1, 2)                    # NCHW


model_forward_jit = jax.jit(model_forward)


def init_params(key):
    keys = jax.random.split(key, 8)
    scale = 0.02
    w0 = scale * jax.random.normal(keys[0], (C0, C_IN, KSIZE, KSIZE), jnp.float32)
    b0 = scale * jax.random.normal(keys[1], (C0,), jnp.float32)
    w1 = scale * jax.random.normal(keys[2], (C1, C0, 1, 1), jnp.float32)
    b1 = scale * jax.random.normal(keys[3], (C1,), jnp.float32)
    w2 = scale * jax.random.normal(keys[4], (C2, C1, 1, 1), jnp.float32)
    b2 = scale * jax.random.normal(keys[5], (C2,), jnp.float32)
    w3 = scale * jax.random.normal(keys[6], (C3, C2, 1, 1), jnp.float32)
    b3 = scale * jax.random.normal(keys[7], (C3,), jnp.float32)
    return (w0, b0, w1, b1, w2, b2, w3, b3)


if __name__ == "__main__":
    key = jax.random.PRNGKey(0)
    k_x, k_p = jax.random.split(key)
    x = jax.random.normal(k_x, (N_BATCH, C_IN, H, W), jnp.float32)
    params = init_params(k_p)

    # One-time weight prep (hoisted out of the forward path).
    pp = prepare_params(params)
    pp = jax.tree_util.tree_map(jax.block_until_ready, pp)

    y = model_forward_jit(x, pp)
    jax.block_until_ready(y)
    assert y.shape == (N_BATCH, C3, 4, 4), y.shape
    print("KERNEL_OK")
</pallas_src>

<mosaic_0001>
module attributes {stable_mosaic.version = 11 : i64} {
  func.func @fused_kernel(%arg0: i32, %arg1: memref<8x4096xbf16, #tpu.memory_space<vmem>>, %arg2: memref<4096x128xbf16, #tpu.memory_space<vmem>>, %arg3: memref<1x128xf32, #tpu.memory_space<vmem>>, %arg4: memref<128x64xf32, #tpu.memory_space<vmem>>, %arg5: memref<1x64xf32, #tpu.memory_space<vmem>>, %arg6: memref<64x16xf32, #tpu.memory_space<vmem>>, %arg7: memref<1x16xf32, #tpu.memory_space<vmem>>, %arg8: memref<8x16xf32, #tpu.memory_space<vmem>>, %arg9: memref<8x128xf32, #tpu.memory_space<vmem>>) attributes {dimension_semantics = [#tpu.dimension_semantics<arbitrary>], iteration_bounds = array<i64: 4>, scalar_prefetch = 0 : i64, scratch_operands = 1 : i64, tpu.core_type = #tpu.core_type<tc>, window_params = [{transform_indices = @transform_0, window_bounds = array<i64: 8, 4096>}, {transform_indices = @transform_1, window_bounds = array<i64: 4096, 128>}, {pipeline_mode = #tpu.pipeline_mode<synchronous>, transform_indices = @transform_2, window_bounds = array<i64: 1, 128>}, {pipeline_mode = #tpu.pipeline_mode<synchronous>, transform_indices = @transform_3, window_bounds = array<i64: 128, 64>}, {pipeline_mode = #tpu.pipeline_mode<synchronous>, transform_indices = @transform_4, window_bounds = array<i64: 1, 64>}, {pipeline_mode = #tpu.pipeline_mode<synchronous>, transform_indices = @transform_5, window_bounds = array<i64: 64, 16>}, {pipeline_mode = #tpu.pipeline_mode<synchronous>, transform_indices = @transform_6, window_bounds = array<i64: 1, 16>}, {pipeline_mode = #tpu.pipeline_mode<synchronous>, transform_indices = @transform_7, window_bounds = array<i64: 8, 16>}]} {
    %c0_i32 = arith.constant 0 : i32
    %0 = arith.cmpi eq, %arg0, %c0_i32 : i32
    %1 = arith.extui %0 : i1 to i32
    %c0_i32_0 = arith.constant 0 : i32
    %2 = arith.cmpi ne, %1, %c0_i32_0 : i32
    scf.if %2 {
      %cst_9 = arith.constant 0.000000e+00 : f32
      %12 = vector.broadcast %cst_9 : f32 to vector<8x128xf32>
      %c0_10 = arith.constant 0 : index
      %c0_11 = arith.constant 0 : index
      %13 = vector.load %arg9[%c0_10, %c0_11] : memref<8x128xf32, #tpu.memory_space<vmem>>, vector<8x128xf32>
      tpu.vector_store %arg9[%c0_10, %c0_11], %12 {strides = array<i32>} : memref<8x128xf32, #tpu.memory_space<vmem>>, vector<8x128xf32>,
    } else {
    }
    %c0 = arith.constant 0 : index
    %c0_1 = arith.constant 0 : index
    %3 = vector.load %arg9[%c0, %c0_1] : memref<8x128xf32, #tpu.memory_space<vmem>>, vector<8x128xf32>
    %c0_2 = arith.constant 0 : index
    %c0_3 = arith.constant 0 : index
    %4 = vector.load %arg1[%c0_2, %c0_3] : memref<8x4096xbf16, #tpu.memory_space<vmem>>, vector<8x4096xbf16>
    %c0_4 = arith.constant 0 : index
    %c0_5 = arith.constant 0 : index
    %5 = vector.load %arg2[%c0_4, %c0_5] : memref<4096x128xbf16, #tpu.memory_space<vmem>>, vector<4096x128xbf16>
    %cst = arith.constant dense<0.000000e+00> : vector<8x128xf32>
    %6 = tpu.matmul %4, %5, %cst {dimension_numbers = #tpu.dot_dimension_numbers<[1], [0], [0], [1], [0, 0, 1, 1], [], []>} : vector<8x4096xbf16>, vector<4096x128xbf16>, vector<8x128xf32> -> vector<8x128xf32>
    %7 = arith.addf %3, %6 : vector<8x128xf32>
    %c0_6 = arith.constant 0 : index
    %c0_7 = arith.constant 0 : index
    %8 = vector.load %arg9[%c0_6, %c0_7] : memref<8x128xf32, #tpu.memory_space<vmem>>, vector<8x128xf32>
    tpu.vector_store %arg9[%c0_6, %c0_7], %7 {strides = array<i32>} : memref<8x128xf32, #tpu.memory_space<vmem>>, vector<8x128xf32>,
    %c3_i32 = arith.constant 3 : i32
    %9 = arith.cmpi eq, %arg0, %c3_i32 : i32
    %10 = arith.extui %9 : i1 to i32
    %c0_i32_8 = arith.constant 0 : i32
    %11 = arith.cmpi ne, %10, %c0_i32_8 : i32
    scf.if %11 {
      %c0_9 = arith.constant 0 : index
      %c0_10 = arith.constant 0 : index
      %12 = vector.load %arg9[%c0_9, %c0_10] : memref<8x128xf32, #tpu.memory_space<vmem>>, vector<8x128xf32>
      %c0_11 = arith.constant 0 : index
      %c0_12 = arith.constant 0 : index
      %13 = vector.load %arg3[%c0_11, %c0_12] : memref<1x128xf32, #tpu.memory_space<vmem>>, vector<1x128xf32>
      %14 = vector.broadcast %13 : vector<1x128xf32> to vector<8x128xf32>
      %15 = arith.addf %12, %14 : vector<8x128xf32>
      %cst_13 = arith.constant 0.000000e+00 : f32
      %16 = vector.broadcast %cst_13 : f32 to vector<8x128xf32>
      %17 = arith.maximumf %15, %16 : vector<8x128xf32>
      %c0_14 = arith.constant 0 : index
      %c0_15 = arith.constant 0 : index
      %18 = vector.load %arg4[%c0_14, %c0_15] : memref<128x64xf32, #tpu.memory_space<vmem>>, vector<128x64xf32>
      %cst_16 = arith.constant dense<0.000000e+00> : vector<8x64xf32>
      %19 = tpu.matmul %17, %18, %cst_16 {dimension_numbers = #tpu.dot_dimension_numbers<[1], [0], [0], [1], [0, 0, 1, 1], [], []>} : vector<8x128xf32>, vector<128x64xf32>, vector<8x64xf32> -> vector<8x64xf32>
      %c0_17 = arith.constant 0 : index
      %c0_18 = arith.constant 0 : index
      %20 = vector.load %arg5[%c0_17, %c0_18] : memref<1x64xf32, #tpu.memory_space<vmem>>, vector<1x64xf32>
      %21 = vector.broadcast %20 : vector<1x64xf32> to vector<8x64xf32>
      %22 = arith.addf %19, %21 : vector<8x64xf32>
      %cst_19 = arith.constant 0.000000e+00 : f32
      %23 = vector.broadcast %cst_19 : f32 to vector<8x64xf32>
      %24 = arith.maximumf %22, %23 : vector<8x64xf32>
      %c0_20 = arith.constant 0 : index
      %c0_21 = arith.constant 0 : index
      %25 = vector.load %arg6[%c0_20, %c0_21] : memref<64x16xf32, #tpu.memory_space<vmem>>, vector<64x16xf32>
      %cst_22 = arith.constant dense<0.000000e+00> : vector<8x16xf32>
      %26 = tpu.matmul %24, %25, %cst_22 {dimension_numbers = #tpu.dot_dimension_numbers<[1], [0], [0], [1], [0, 0, 1, 1], [], []>} : vector<8x64xf32>, vector<64x16xf32>, vector<8x16xf32> -> vector<8x16xf32>
      %c0_23 = arith.constant 0 : index
      %c0_24 = arith.constant 0 : index
      %27 = vector.load %arg7[%c0_23, %c0_24] : memref<1x16xf32, #tpu.memory_space<vmem>>, vector<1x16xf32>
      %28 = vector.broadcast %27 : vector<1x16xf32> to vector<8x16xf32>
      %29 = arith.addf %26, %28 : vector<8x16xf32>
      %cst_25 = arith.constant 0.000000e+00 : f32
      %30 = vector.broadcast %cst_25 : f32 to vector<8x16xf32>
      %31 = arith.maximumf %29, %30 : vector<8x16xf32>
      %c0_26 = arith.constant 0 : index
      %c0_27 = arith.constant 0 : index
      %32 = vector.load %arg8[%c0_26, %c0_27] : memref<8x16xf32, #tpu.memory_space<vmem>>, vector<8x16xf32>
      tpu.vector_store %arg8[%c0_26, %c0_27], %31 {strides = array<i32>} : memref<8x16xf32, #tpu.memory_space<vmem>>, vector<8x16xf32>,
    } else {
    }
    return
  }
  func.func @transform_0(%arg0: i32) -> (i32, i32) {
    %c0_i32 = arith.constant 0 : i32
    %c0_i32_0 = arith.constant 0 : i32
    return %c0_i32, %arg0 : i32, i32
  }
  func.func @transform_1(%arg0: i32) -> (i32, i32) {
    %c0_i32 = arith.constant 0 : i32
    %c0_i32_0 = arith.constant 0 : i32
    return %arg0, %c0_i32 : i32, i32
  }
  func.func @transform_2(%arg0: i32) -> (i32, i32) {
    %c0_i32 = arith.constant 0 : i32
    %c0_i32_0 = arith.constant 0 : i32
    %c0_i32_1 = arith.constant 0 : i32
    return %c0_i32, %c0_i32_0 : i32, i32
  }
  func.func @transform_3(%arg0: i32) -> (i32, i32) {
    %c0_i32 = arith.constant 0 : i32
    %c0_i32_0 = arith.constant 0 : i32
    %c0_i32_1 = arith.constant 0 : i32
    return %c0_i32, %c0_i32_0 : i32, i32
  }
  func.func @transform_4(%arg0: i32) -> (i32, i32) {
    %c0_i32 = arith.constant 0 : i32
    %c0_i32_0 = arith.constant 0 : i32
    %c0_i32_1 = arith.constant 0 : i32
    return %c0_i32, %c0_i32_0 : i32, i32
  }
  func.func @transform_5(%arg0: i32) -> (i32, i32) {
    %c0_i32 = arith.constant 0 : i32
    %c0_i32_0 = arith.constant 0 : i32
    %c0_i32_1 = arith.constant 0 : i32
    return %c0_i32, %c0_i32_0 : i32, i32
  }
  func.func @transform_6(%arg0: i32) -> (i32, i32) {
    %c0_i32 = arith.constant 0 : i32
    %c0_i32_0 = arith.constant 0 : i32
    %c0_i32_1 = arith.constant 0 : i32
    return %c0_i32, %c0_i32_0 : i32, i32
  }
  func.func @transform_7(%arg0: i32) -> (i32, i32) {
    %c0_i32 = arith.constant 0 : i32
    %c0_i32_0 = arith.constant 0 : i32
    %c0_i32_1 = arith.constant 0 : i32
    return %c0_i32, %c0_i32_0 : i32, i32
  }
}

</mosaic_0001>

<llo_original>
// kernel: model_forward.1
$region0: #{model_forward.1}
  #allocation0 [shape = 'u32[]', space=smem, size = 0x4, offset = 0x4, fixed_abs, tag = 'smem constant byte address 0x4 - core index']
  #allocation1 [shape = 'u32[144,128]{1,0:T(1,128)}', space=vmem, size = 0x12000, scoped, tag = 'internal scratch']
  #allocation2 [shape = 'f32[8,128]{1,0:T(8,128)}', space=vmem, size = 0x1000, scoped, tag = 'scratch operand']
  %s0 = inlined_call_operand.vmem [shape: bf16[8,16384], index: 0, kind: input, shape index: {}]
  %s1 = inlined_call_operand.hbm [shape: bf16[16384,128], index: 1, kind: input, shape index: {}]
  %s2 = inlined_call_operand.hbm [shape: f32[1,128], index: 2, kind: input, shape index: {}]
  %s3 = inlined_call_operand.vmem [shape: f32[128,64], index: 3, kind: input, shape index: {}]
  %s4 = inlined_call_operand.hbm [shape: f32[1,64], index: 4, kind: input, shape index: {}]
  %s5 = inlined_call_operand.vmem [shape: f32[64,16], index: 5, kind: input, shape index: {}]
  %s6 = inlined_call_operand.hbm [shape: f32[1,16], index: 6, kind: input, shape index: {}]
  %s7 = inlined_call_operand.vmem [shape: f32[8,16], index: 7, kind: output, shape index: {}]
  %s8 = sld [smem:[#allocation0]]
  $region85: #{model_forward.1} parent=0
    _
  %s10 = ssub.s32 1, %s8
  %s11 = scalar_select 0, %s10, %s8
  $region1: #{model_forward.1} parent=0
    #allocation3 [shape = 'u8[2097152]{0}', space=vmem, size = 0x200000, scoped, tag = 'input window, operand 1']
    #allocation4 [shape = 's32[2]{0}', space=sflag, size = 0x8, scoped, tag = 'scoped memory for model_forward.1']
    #allocation5 [shape = 'u8[512]{0}', space=vmem, size = 0x400, scoped, tag = 'input window, operand 2, single buffered']
    #allocation6 [shape = 's32[1]{0}', space=sflag, size = 0x4, scoped, tag = 'scoped memory for model_forward.1']
    #allocation7 [shape = 'u8[512]{0}', space=vmem, size = 0x400, scoped, tag = 'input window, operand 4, single buffered']
    #allocation8 [shape = 'u8[512]{0}', space=vmem, size = 0x400, scoped, tag = 'input window, operand 6, single buffered']
    #allocation9 [shape = 's32[1]{0}', space=sflag, size = 0x4, scoped, tag = 'scoped memory for model_forward.1']
    %12 = vsyncpa [#allocation4], 0
    %s13 = scalar_lea.sflag [#allocation4], 1
    %14 = vsyncpa %s13, 0
    %15 = vsyncpa [#allocation6], 0
    %16 = vsyncpa [#allocation9], 0
    loop: start=0, step=1, limit=6
    $region2: #{model_forward.1} parent=1 // loop_pre_header
      _
    $region3: #{model_forward.1} parent=1 // loop_header
      %s18 = sphi 0, %s22
      %p19 = scmp.ge.s32.totalorder %s18, 6
      %s28 = sphi 0, %s30
      %s31 = sphi 0, %s28
      %s32 = sphi 0, %s31
      %s48 = sphi 0, %s32
      %s54 = sphi 0, %s56
      %s57 = sphi 0, %s54
      %s58 = sphi 0, %s57
      %s74 = sphi 0, %s58
      %s78 = sphi 0, %s78
      %s80 = sphi 0, %s78
      %s81 = sphi 0, %s80
      %s95 = sphi 0, %s81
      %s99 = sphi 0, %s99
      %s101 = sphi 0, %s99
      %s102 = sphi 0, %s101
      %s116 = sphi 0, %s102
      %s120 = sphi 0, %s120
      %s122 = sphi 0, %s120
      %s123 = sphi 0, %s122
      %s137 = sphi 0, %s123
      %s141 = sphi 0, %s141
      %s143 = sphi 0, %s141
      %s144 = sphi 0, %s143
      %s158 = sphi 0, %s144
      %s162 = sphi 0, %s162
      %s164 = sphi 0, %s162
      %s165 = sphi 0, %s164
      %s179 = sphi 0, %s165
      %s183 = sphi 0, %s183
      %s185 = sphi 0, %s183
      %s186 = sphi 0, %s185
      %s200 = sphi 0, %s186
    $region4: #{model_forward.1} parent=1 // loop_header_branch
      %21 = sbr.rel (%p19) target = $region8
    $region5: #{model_forward.1} parent=1 // loop_body
      %s23 = ssub.s32 %s18, 1
      %s24 = ssub.s32 %s18, 2
      %s25 = sadd.s32 %s18, 1
      %s26 = ssub.s32 %s18, %s25
      %p27 = scmp.eq.s32.totalorder %s26, 0
      %s29 = sadd.s32 %s28, 1
      %s30 = scalar_select %p27, %s28, %s29
      %p33 = pneg %p27
      %p34 = scmp.eq.s32.totalorder %s18, 3
      %p35 = por %p33, %p34
      %p36 = scmp.ne.s32.totalorder %s28, %s31
      %p37 = scmp.eq.s32.totalorder %s18, 0
      %p38 = por %p36, %p37
      %p39 = scmp.ne.s32.totalorder %s28, %s31
      %p40 = scmp.eq.s32.totalorder %s23, 3
      %p41 = por %p39, %p40
      %p42 = scmp.ne.s32.totalorder %s31, %s32
      %p43 = scmp.eq.s32.totalorder %s23, 0
      %p44 = por %p42, %p43
      %p45 = scmp.ne.s32.totalorder %s31, %s32
      %p46 = scmp.eq.s32.totalorder %s24, 3
      %p47 = por %p45, %p46
      %p49 = scmp.ne.s32.totalorder %s32, %s48
      %p50 = scmp.eq.s32.totalorder %s24, 0
      %p51 = por %p49, %p50
      %s52 = ssub.s32 %s18, %s25
      %p53 = scmp.eq.s32.totalorder %s52, 0
      %s55 = sadd.s32 %s54, 1
      %s56 = scalar_select %p53, %s54, %s55
      %p59 = pneg %p53
      %p60 = scmp.eq.s32.totalorder %s18, 3
      %p61 = por %p59, %p60
      %p62 = scmp.ne.s32.totalorder %s54, %s57
      %p63 = scmp.eq.s32.totalorder %s18, 0
      %p64 = por %p62, %p63
      %p65 = scmp.ne.s32.totalorder %s54, %s57
      %p66 = scmp.eq.s32.totalorder %s23, 3
      %p67 = por %p65, %p66
      %p68 = scmp.ne.s32.totalorder %s57, %s58
      %p69 = scmp.eq.s32.totalorder %s23, 0
      %p70 = por %p68, %p69
      %p71 = scmp.ne.s32.totalorder %s57, %s58
      %p72 = scmp.eq.s32.totalorder %s24, 3
      %p73 = por %p71, %p72
      %p75 = scmp.ne.s32.totalorder %s58, %s74
      %p76 = scmp.eq.s32.totalorder %s24, 0
      %p77 = por %p75, %p76
      %s79 = sadd.s32 %s78, 1
      %p82 = scmp.eq.s32.totalorder %s18, 3
      %p83 = scmp.ne.s32.totalorder %s78, %s80
      %p84 = scmp.eq.s32.totalorder %s18, 0
      %p85 = por %p83, %p84
      %p86 = scmp.ne.s32.totalorder %s78, %s80
      %p87 = scmp.eq.s32.totalorder %s23, 3
      %p88 = por %p86, %p87
      %p89 = scmp.ne.s32.totalorder %s80, %s81
      %p90 = scmp.eq.s32.totalorder %s23, 0
      %p91 = por %p89, %p90
      %p92 = scmp.ne.s32.totalorder %s80, %s81
      %p93 = scmp.eq.s32.totalorder %s24, 3
      %p94 = por %p92, %p93
      %p96 = scmp.ne.s32.totalorder %s81, %s95
      %p97 = scmp.eq.s32.totalorder %s24, 0
      %p98 = por %p96, %p97
      %s100 = sadd.s32 %s99, 1
      %p103 = scmp.eq.s32.totalorder %s18, 3
      %p104 = scmp.ne.s32.totalorder %s99, %s101
      %p105 = scmp.eq.s32.totalorder %s18, 0
      %p106 = por %p104, %p105
      %p107 = scmp.ne.s32.totalorder %s99, %s101
      %p108 = scmp.eq.s32.totalorder %s23, 3
      %p109 = por %p107, %p108
      %p110 = scmp.ne.s32.totalorder %s101, %s102
      %p111 = scmp.eq.s32.totalorder %s23, 0
      %p112 = por %p110, %p111
      %p113 = scmp.ne.s32.totalorder %s101, %s102
      %p114 = scmp.eq.s32.totalorder %s24, 3
      %p115 = por %p113, %p114
      %p117 = scmp.ne.s32.totalorder %s102, %s116
      %p118 = scmp.eq.s32.totalorder %s24, 0
      %p119 = por %p117, %p118
      %s121 = sadd.s32 %s120, 1
      %p124 = scmp.eq.s32.totalorder %s18, 3
      %p125 = scmp.ne.s32.totalorder %s120, %s122
      %p126 = scmp.eq.s32.totalorder %s18, 0
      %p127 = por %p125, %p126
      %p128 = scmp.ne.s32.totalorder %s120, %s122
      %p129 = scmp.eq.s32.totalorder %s23, 3
      %p130 = por %p128, %p129
      %p131 = scmp.ne.s32.totalorder %s122, %s123
      %p132 = scmp.eq.s32.totalorder %s23, 0
      %p133 = por %p131, %p132
      %p134 = scmp.ne.s32.totalorder %s122, %s123
      %p135 = scmp.eq.s32.totalorder %s24, 3
      %p136 = por %p134, %p135
      %p138 = scmp.ne.s32.totalorder %s123, %s137
      %p139 = scmp.eq.s32.totalorder %s24, 0
      %p140 = por %p138, %p139
      %s142 = sadd.s32 %s141, 1
      %p145 = scmp.eq.s32.totalorder %s18, 3
      %p146 = scmp.ne.s32.totalorder %s141, %s143
      %p147 = scmp.eq.s32.totalorder %s18, 0
      %p148 = por %p146, %p147
      %p149 = scmp.ne.s32.totalorder %s141, %s143
      %p150 = scmp.eq.s32.totalorder %s23, 3
      %p151 = por %p149, %p150
      %p152 = scmp.ne.s32.totalorder %s143, %s144
      %p153 = scmp.eq.s32.totalorder %s23, 0
      %p154 = por %p152, %p153
      %p155 = scmp.ne.s32.totalorder %s143, %s144
      %p156 = scmp.eq.s32.totalorder %s24, 3
      %p157 = por %p155, %p156
      %p159 = scmp.ne.s32.totalorder %s144, %s158
      %p160 = scmp.eq.s32.totalorder %s24, 0
      %p161 = por %p159, %p160
      %s163 = sadd.s32 %s162, 1
      %p166 = scmp.eq.s32.totalorder %s18, 3
      %p167 = scmp.ne.s32.totalorder %s162, %s164
      %p168 = scmp.eq.s32.totalorder %s18, 0
      %p169 = por %p167, %p168
      %p170 = scmp.ne.s32.totalorder %s162, %s164
      %p171 = scmp.eq.s32.totalorder %s23, 3
      %p172 = por %p170, %p171
      %p173 = scmp.ne.s32.totalorder %s164, %s165
      %p174 = scmp.eq.s32.totalorder %s23, 0
      %p175 = por %p173, %p174
      %p176 = scmp.ne.s32.totalorder %s164, %s165
      %p177 = scmp.eq.s32.totalorder %s24, 3
      %p178 = por %p176, %p177
      %p180 = scmp.ne.s32.totalorder %s165, %s179
      %p181 = scmp.eq.s32.totalorder %s24, 0
      %p182 = por %p180, %p181
      %s184 = sadd.s32 %s183, 1
      %p187 = scmp.eq.s32.totalorder %s18, 3
      %p188 = scmp.ne.s32.totalorder %s183, %s185
      %p189 = scmp.eq.s32.totalorder %s18, 0
      %p190 = por %p188, %p189
      %p191 = scmp.ne.s32.totalorder %s183, %s185
      %p192 = scmp.eq.s32.totalorder %s23, 3
      %p193 = por %p191, %p192
      %p194 = scmp.ne.s32.totalorder %s185, %s186
      %p195 = scmp.eq.s32.totalorder %s23, 0
      %p196 = por %p194, %p195
      %p197 = scmp.ne.s32.totalorder %s185, %s186
      %p198 = scmp.eq.s32.totalorder %s24, 3
      %p199 = por %p197, %p198
      %p201 = scmp.ne.s32.totalorder %s186, %s200
      %p202 = scmp.eq.s32.totalorder %s24, 0
      %p203 = por %p201, %p202
      %p204 = scmp.le.s32.totalorder 1, %s18
      %p205 = scmp.lt.s32.totalorder %s18, 5
      %p206 = pnand %p204, %p205
      %p207 = pneg %p206
      // Predicated region
      $region9: #{model_forward.1} parent=5 // pred_check
        _
      $region10: #{model_forward.1} parent=5 // pred_check_branch
        %209 = sbr.rel (%p206) target = $region12
      $region11: #{model_forward.1} parent=5 // pred_region
        %s210 = ssub.s32 %s18, 1
        // Predicated region
        $region13: #{model_forward.1} parent=11 // pred_check
          %p211 = pneg %p91
        $region14: #{model_forward.1} parent=11 // pred_check_branch
          %213 = sbr.rel (%p211) target = $region16
        $region15: #{model_forward.1} parent=11 // pred_region
          %s215 = ssub.s32 16, 16
          %216 = vsyncadd [#allocation6], %s215
          %s218 = sshll.u32 [#allocation5], 4
          %s219 = int_to_ptr.vmem [resolvable:$true] %s218
          %221 = dma.hbm_to_vmem [thread:$0]  %s2, 16, %s219, [#allocation6]
        $region16: #{model_forward.1} parent=11 // pred_fallthru
          _
        // Predicated region
        $region17: #{model_forward.1} parent=11 // pred_check
          %p222 = pneg %p112
        $region18: #{model_forward.1} parent=11 // pred_check_branch
          %224 = sbr.rel (%p222) target = $region20
        $region19: #{model_forward.1} parent=11 // pred_region
          _
        $region20: #{model_forward.1} parent=11 // pred_fallthru
          _
        // Predicated region
        $region21: #{model_forward.1} parent=11 // pred_check
          %p225 = pneg %p133
        $region22: #{model_forward.1} parent=11 // pred_check_branch
          %227 = sbr.rel (%p225) target = $region24
        $region23: #{model_forward.1} parent=11 // pred_region
          %s229 = ssub.s32 16, 16
          %230 = vsyncadd [#allocation6], %s229
          %s232 = sshll.u32 [#allocation7], 4
          %s233 = int_to_ptr.vmem [resolvable:$true] %s232
          %235 = dma.hbm_to_vmem [thread:$0]  %s4, 16, %s233, [#allocation6]
        $region24: #{model_forward.1} parent=11 // pred_fallthru
          _
        // Predicated region
        $region25: #{model_forward.1} parent=11 // pred_check
          %p236 = pneg %p154
        $region26: #{model_forward.1} parent=11 // pred_check_branch
          %238 = sbr.rel (%p236) target = $region28
        $region27: #{model_forward.1} parent=11 // pred_region
          _
        $region28: #{model_forward.1} parent=11 // pred_fallthru
          _
        // Predicated region
        $region29: #{model_forward.1} parent=11 // pred_check
          %p239 = pneg %p175
        $region30: #{model_forward.1} parent=11 // pred_check_branch
          %241 = sbr.rel (%p239) target = $region32
        $region31: #{model_forward.1} parent=11 // pred_region
          %s243 = ssub.s32 16, 16
          %244 = vsyncadd [#allocation9], %s243
          %s246 = sshll.u32 [#allocation8], 4
          %s247 = int_to_ptr.vmem [resolvable:$true] %s246
          %249 = dma.hbm_to_vmem [thread:$0]  %s6, 16, %s247, [#allocation9]
        $region32: #{model_forward.1} parent=11 // pred_fallthru
          _
      $region12: #{model_forward.1} parent=5 // pred_fallthru
        _
      %p250 = scmp.lt.s32.totalorder %s18, 4
      // Predicated region
      $region33: #{model_forward.1} parent=5 // pred_check
        %p251 = pneg %p250
      $region34: #{model_forward.1} parent=5 // pred_check_branch
        %253 = sbr.rel (%p251) target = $region36
      $region35: #{model_forward.1} parent=5 // pred_region
        // Predicated region
        $region37: #{model_forward.1} parent=35 // pred_check
          %p254 = pneg %p38
        $region38: #{model_forward.1} parent=35 // pred_check_branch
          %256 = sbr.rel (%p254) target = $region40
        $region39: #{model_forward.1} parent=35 // pred_region
          %s257 = smul.u32 32, %s18
          %p258 = scmp.lt.s32.totalorder %s257, 127
          %s259 = scalar_select %p258, %s257, 127
          %s260 = smul.addr %s259, 4
          %s261 = scalar_lea.vmem %s0, %s260
          %s262 = smul.u32 32, %s18
        $region40: #{model_forward.1} parent=35 // pred_fallthru
          _
        // Predicated region
        $region41: #{model_forward.1} parent=35 // pred_check
          %p263 = pneg %p64
        $region42: #{model_forward.1} parent=35 // pred_check_branch
          %265 = sbr.rel (%p263) target = $region44
        $region43: #{model_forward.1} parent=35 // pred_region
          %s266 = sand.u32 %s54, 1
          %s267 = scalar_lea.sflag [#allocation4], %s266
          %s268 = sand.u32 %s54, 1
          %s269 = smul.addr %s268, 2048
          %s270 = scalar_lea.vmem [#allocation3], %s269
          %s271 = smul.u32 512, %s18
          %s273 = ssub.s32 32768, 32768
          %274 = vsyncadd %s267, %s273
          %s275 = smul.addr %s271, 64
          %s276 = scalar_lea.hbm %s1, %s275
          %s277 = sshll.u32 %s270, 4
          %s278 = int_to_ptr.vmem [resolvable:$true] %s277
          %283 = dma.hbm_to_vmem [thread:$0]  %s276, 32768, %s278, %s267, 64, 64, 4
        $region44: #{model_forward.1} parent=35 // pred_fallthru
          _
      $region36: #{model_forward.1} parent=5 // pred_fallthru
        _
      %p284 = scmp.le.s32.totalorder 1, %s18
      %p285 = scmp.lt.s32.totalorder %s18, 5
      %p286 = pnand %p284, %p285
      %p287 = pneg %p286
      // Predicated region
      $region45: #{model_forward.1} parent=5 // pred_check
        _
      $region46: #{model_forward.1} parent=5 // pred_check_branch
        %289 = sbr.rel (%p286) target = $region48
      $region47: #{model_forward.1} parent=5 // pred_region
        %s290 = ssub.s32 %s18, 1
        %s291 = sand.u32 %s57, 1
        %s292 = scalar_lea.sflag [#allocation4], %s291
        %s293 = sand.u32 %s57, 1
        %s294 = smul.addr %s293, 2048
        %s295 = scalar_lea.vmem [#allocation3], %s294
        // Predicated region
        $region49: #{model_forward.1} parent=47 // pred_check
          %p296 = pneg %p70
        $region50: #{model_forward.1} parent=47 // pred_check_branch
          %298 = sbr.rel (%p296) target = $region52
        $region51: #{model_forward.1} parent=47 // pred_region
          %299 = dma.done %s292, 32768
        $region52: #{model_forward.1} parent=47 // pred_fallthru
          _
        // Predicated region
        $region53: #{model_forward.1} parent=47 // pred_check
          %p300 = pneg %p91
        $region54: #{model_forward.1} parent=47 // pred_check_branch
          %302 = sbr.rel (%p300) target = $region56
        $region55: #{model_forward.1} parent=47 // pred_region
          %303 = dma.done [#allocation6], 16
        $region56: #{model_forward.1} parent=47 // pred_fallthru
          _
        // Predicated region
        $region57: #{model_forward.1} parent=47 // pred_check
          %p304 = pneg %p133
        $region58: #{model_forward.1} parent=47 // pred_check_branch
          %306 = sbr.rel (%p304) target = $region60
        $region59: #{model_forward.1} parent=47 // pred_region
          %307 = dma.done [#allocation6], 16
        $region60: #{model_forward.1} parent=47 // pred_fallthru
          _
        // Predicated region
        $region61: #{model_forward.1} parent=47 // pred_check
          %p308 = pneg %p175
        $region62: #{model_forward.1} parent=47 // pred_check_branch
          %310 = sbr.rel (%p308) target = $region64
        $region63: #{model_forward.1} parent=47 // pred_region
          %311 = dma.done [#allocation9], 16
        $region64: #{model_forward.1} parent=47 // pred_fallthru
          _
        %s312 = smul.u32 32, %s23
        %p313 = scmp.lt.s32.totalorder %s312, 127
        %s314 = scalar_select %p313, %s312, 127
        %s315 = smul.addr %s314, 4
        %s316 = scalar_lea.vmem %s0, %s315
        %p317 = pneg %p44
        %p318 = pneg %p41
        %s319 = sand.u32 %s57, 1
        %s320 = scalar_lea.sflag [#allocation4], %s319
        %s321 = sand.u32 %s57, 1
        %s322 = smul.addr %s321, 2048
        %s323 = scalar_lea.vmem [#allocation3], %s322
        %p324 = pneg %p70
        %p325 = pneg %p67
        %p326 = pneg %p91
        %p327 = pneg %p88
        %p328 = pneg %p112
        %p329 = pneg %p109
        %p330 = pneg %p133
        %p331 = pneg %p130
        %p332 = pneg %p154
        %p333 = pneg %p151
        %p334 = pneg %p175
        %p335 = pneg %p172
        %p336 = pneg %p196
        %p337 = pneg %p193
        %s338 = smul.u32 32, %s23
        %p339 = scmp.lt.s32.totalorder %s338, 127
        %s340 = scalar_select %p339, %s338, 127
        %s341 = smul.addr %s340, 4
        %s342 = scalar_lea.vmem %s0, %s341
        %s343 = smul.u32 32, %s23
        %s344 = smul.u32 512, %s23
        %p346 = scmp.eq.s32.totalorder %s23, 0
        // Predicated region
        $region65: #{model_forward.1} parent=47 // pred_check
          %p347 = pneg %p346
        $region66: #{model_forward.1} parent=47 // pred_check_branch
          %349 = sbr.rel (%p347) target = $region68
        $region67: #{model_forward.1} parent=47 // pred_region
          %350 = vst [vmem:[#allocation2] sm:$0xff] 0.0
        $region68: #{model_forward.1} parent=47 // pred_fallthru
          _
        %v351 = vld [vmem:[#allocation2] sm:$0xff]
        %v352 = vld [vmem:[%s342] sm:$0xff]
        %v353 = vld [vmem:[%s342 + $0x8] sm:$0xff]
        %v354 = vld [vmem:[%s342 + $0x10] sm:$0xff]
        %v355 = vld [vmem:[%s342 + $0x18] sm:$0xff]
        %v356 = vld [vmem:[%s342 + $0x20] sm:$0xff]
        %v357 = vld [vmem:[%s342 + $0x28] sm:$0xff]
        %v358 = vld [vmem:[%s342 + $0x30] sm:$0xff]
        %v359 = vld [vmem:[%s342 + $0x38] sm:$0xff]
        %v360 = vld [vmem:[%s342 + $0x40] sm:$0xff]
        %v361 = vld [vmem:[%s342 + $0x48] sm:$0xff]
        %v362 = vld [vmem:[%s342 + $0x50] sm:$0xff]
        %v363 = vld [vmem:[%s342 + $0x58] sm:$0xff]
        %v364 = vld [vmem:[%s342 + $0x60] sm:$0xff]
        %v365 = vld [vmem:[%s342 + $0x68] sm:$0xff]
        %v366 = vld [vmem:[%s342 + $0x70] sm:$0xff]
        %v367 = vld [vmem:[%s342 + $0x78] sm:$0xff]
        %v368 = vld [vmem:[%s295] sm:$0xf]
        %v369 = vld [vmem:[%s295 + $0x4] sm:$0xf]
        %v370 = vld [vmem:[%s295 + $0x8] sm:$0xf]
        %v371 = vld [vmem:[%s295 + $0xc] sm:$0xf]
        %v372 = vld [vmem:[%s295 + $0x10] sm:$0xf]
        %v373 = vld [vmem:[%s295 + $0x14] sm:$0xf]
        %v374 = vld [vmem:[%s295 + $0x18] sm:$0xf]
        %v375 = vld [vmem:[%s295 + $0x1c] sm:$0xf]
        %v376 = vld [vmem:[%s295 + $0x20] sm:$0xf]
        %v377 = vld [vmem:[%s295 + $0x24] sm:$0xf]
        %v378 = vld [vmem:[%s295 + $0x28] sm:$0xf]
        %v379 = vld [vmem:[%s295 + $0x2c] sm:$0xf]
        %v380 = vld [vmem:[%s295 + $0x30] sm:$0xf]
        %v381 = vld [vmem:[%s295 + $0x34] sm:$0xf]
        %v382 = vld [vmem:[%s295 + $0x38] sm:$0xf]
        %v383 = vld [vmem:[%s295 + $0x3c] sm:$0xf]
        %v384 = vld [vmem:[%s295 + $0x40] sm:$0xf]
        %v385 = vld [vmem:[%s295 + $0x44] sm:$0xf]
        %v386 = vld [vmem:[%s295 + $0x48] sm:$0xf]
        %v387 = vld [vmem:[%s295 + $0x4c] sm:$0xf]
        %v388 = vld [vmem:[%s295 + $0x50] sm:$0xf]
        %v389 = vld [vmem:[%s295 + $0x54] sm:$0xf]
        %v390 = vld [vmem:[%s295 + $0x58] sm:$0xf]
        %v391 = vld [vmem:[%s295 + $0x5c] sm:$0xf]
        %v392 = vld [vmem:[%s295 + $0x60] sm:$0xf]
        %v393 = vld [vmem:[%s295 + $0x64] sm:$0xf]
        %v394 = vld [vmem:[%s295 + $0x68] sm:$0xf]
        %v395 = vld [vmem:[%s295 + $0x6c] sm:$0xf]
        %v396 = vld [vmem:[%s295 + $0x70] sm:$0xf]
        %v397 = vld [vmem:[%s295 + $0x74] sm:$0xf]
        %v398 = vld [vmem:[%s295 + $0x78] sm:$0xf]
        %v399 = vld [vmem:[%s295 + $0x7c] sm:$0xf]
        %v400 = vld [vmem:[%s295 + $0x80] sm:$0xf]
        %v401 = vld [vmem:[%s295 + $0x84] sm:$0xf]
        %v402 = vld [vmem:[%s295 + $0x88] sm:$0xf]
        %v403 = vld [vmem:[%s295 + $0x8c] sm:$0xf]
        %v404 = vld [vmem:[%s295 + $0x90] sm:$0xf]
        %v405 = vld [vmem:[%s295 + $0x94] sm:$0xf]
        %v406 = vld [vmem:[%s295 + $0x98] sm:$0xf]
        %v407 = vld [vmem:[%s295 + $0x9c] sm:$0xf]
        %v408 = vld [vmem:[%s295 + $0xa0] sm:$0xf]
        %v409 = vld [vmem:[%s295 + $0xa4] sm:$0xf]
        %v410 = vld [vmem:[%s295 + $0xa8] sm:$0xf]
        %v411 = vld [vmem:[%s295 + $0xac] sm:$0xf]
        %v412 = vld [vmem:[%s295 + $0xb0] sm:$0xf]
        %v413 = vld [vmem:[%s295 + $0xb4] sm:$0xf]
        %v414 = vld [vmem:[%s295 + $0xb8] sm:$0xf]
        %v415 = vld [vmem:[%s295 + $0xbc] sm:$0xf]
        %v416 = vld [vmem:[%s295 + $0xc0] sm:$0xf]
        %v417 = vld [vmem:[%s295 + $0xc4] sm:$0xf]
        %v418 = vld [vmem:[%s295 + $0xc8] sm:$0xf]
        %v419 = vld [vmem:[%s295 + $0xcc] sm:$0xf]
        %v420 = vld [vmem:[%s295 + $0xd0] sm:$0xf]
        %v421 = vld [vmem:[%s295 + $0xd4] sm:$0xf]
        %v422 = vld [vmem:[%s295 + $0xd8] sm:$0xf]
        %v423 = vld [vmem:[%s295 + $0xdc] sm:$0xf]
        %v424 = vld [vmem:[%s295 + $0xe0] sm:$0xf]
        %v425 = vld [vmem:[%s295 + $0xe4] sm:$0xf]
        %v426 = vld [vmem:[%s295 + $0xe8] sm:$0xf]
        %v427 = vld [vmem:[%s295 + $0xec] sm:$0xf]
        %v428 = vld [vmem:[%s295 + $0xf0] sm:$0xf]
        %v429 = vld [vmem:[%s295 + $0xf4] sm:$0xf]
        %v430 = vld [vmem:[%s295 + $0xf8] sm:$0xf]
        %v431 = vld [vmem:[%s295 + $0xfc] sm:$0xf]
        %v432 = vld [vmem:[%s295 + $0x100] sm:$0xf]
        %v433 = vld [vmem:[%s295 + $0x104] sm:$0xf]
        %v434 = vld [vmem:[%s295 + $0x108] sm:$0xf]
        %v435 = vld [vmem:[%s295 + $0x10c] sm:$0xf]
        %v436 = vld [vmem:[%s295 + $0x110] sm:$0xf]
        %v437 = vld [vmem:[%s295 + $0x114] sm:$0xf]
        %v438 = vld [vmem:[%s295 + $0x118] sm:$0xf]
        %v439 = vld [vmem:[%s295 + $0x11c] sm:$0xf]
        %v440 = vld [vmem:[%s295 + $0x120] sm:$0xf]
        %v441 = vld [vmem:[%s295 + $0x124] sm:$0xf]
        %v442 = vld [vmem:[%s295 + $0x128] sm:$0xf]
        %v443 = vld [vmem:[%s295 + $0x12c] sm:$0xf]
        %v444 = vld [vmem:[%s295 + $0x130] sm:$0xf]
        %v445 = vld [vmem:[%s295 + $0x134] sm:$0xf]
        %v446 = vld [vmem:[%s295 + $0x138] sm:$0xf]
        %v447 = vld [vmem:[%s295 + $0x13c] sm:$0xf]
        %v448 = vld [vmem:[%s295 + $0x140] sm:$0xf]
        %v449 = vld [vmem:[%s295 + $0x144] sm:$0xf]
        %v450 = vld [vmem:[%s295 + $0x148] sm:$0xf]
        %v451 = vld [vmem:[%s295 + $0x14c] sm:$0xf]
        %v452 = vld [vmem:[%s295 + $0x150] sm:$0xf]
        %v453 = vld [vmem:[%s295 + $0x154] sm:$0xf]
        %v454 = vld [vmem:[%s295 + $0x158] sm:$0xf]
        %v455 = vld [vmem:[%s295 + $0x15c] sm:$0xf]
        %v456 = vld [vmem:[%s295 + $0x160] sm:$0xf]
        %v457 = vld [vmem:[%s295 + $0x164] sm:$0xf]
        %v458 = vld [vmem:[%s295 + $0x168] sm:$0xf]
        %v459 = vld [vmem:[%s295 + $0x16c] sm:$0xf]
        %v460 = vld [vmem:[%s295 + $0x170] sm:$0xf]
        %v461 = vld [vmem:[%s295 + $0x174] sm:$0xf]
        %v462 = vld [vmem:[%s295 + $0x178] sm:$0xf]
        %v463 = vld [vmem:[%s295 + $0x17c] sm:$0xf]
        %v464 = vld [vmem:[%s295 + $0x180] sm:$0xf]
        %v465 = vld [vmem:[%s295 + $0x184] sm:$0xf]
        %v466 = vld [vmem:[%s295 + $0x188] sm:$0xf]
        %v467 = vld [vmem:[%s295 + $0x18c] sm:$0xf]
        %v468 = vld [vmem:[%s295 + $0x190] sm:$0xf]
        %v469 = vld [vmem:[%s295 + $0x194] sm:$0xf]
        %v470 = vld [vmem:[%s295 + $0x198] sm:$0xf]
        %v471 = vld [vmem:[%s295 + $0x19c] sm:$0xf]
        %v472 = vld [vmem:[%s295 + $0x1a0] sm:$0xf]
        %v473 = vld [vmem:[%s295 + $0x1a4] sm:$0xf]
        %v474 = vld [vmem:[%s295 + $0x1a8] sm:$0xf]
        %v475 = vld [vmem:[%s295 + $0x1ac] sm:$0xf]
        %v476 = vld [vmem:[%s295 + $0x1b0] sm:$0xf]
        %v477 = vld [vmem:[%s295 + $0x1b4] sm:$0xf]
        %v478 = vld [vmem:[%s295 + $0x1b8] sm:$0xf]
        %v479 = vld [vmem:[%s295 + $0x1bc] sm:$0xf]
        %v480 = vld [vmem:[%s295 + $0x1c0] sm:$0xf]
        %v481 = vld [vmem:[%s295 + $0x1c4] sm:$0xf]
        %v482 = vld [vmem:[%s295 + $0x1c8] sm:$0xf]
        %v483 = vld [vmem:[%s295 + $0x1cc] sm:$0xf]
        %v484 = vld [vmem:[%s295 + $0x1d0] sm:$0xf]
        %v485 = vld [vmem:[%s295 + $0x1d4] sm:$0xf]
        %v486 = vld [vmem:[%s295 + $0x1d8] sm:$0xf]
        %v487 = vld [vmem:[%s295 + $0x1dc] sm:$0xf]
        %v488 = vld [vmem:[%s295 + $0x1e0] sm:$0xf]
        %v489 = vld [vmem:[%s295 + $0x1e4] sm:$0xf]
        %v490 = vld [vmem:[%s295 + $0x1e8] sm:$0xf]
        %v491 = vld [vmem:[%s295 + $0x1ec] sm:$0xf]
        %v492 = vld [vmem:[%s295 + $0x1f0] sm:$0xf]
        %v493 = vld [vmem:[%s295 + $0x1f4] sm:$0xf]
        %v494 = vld [vmem:[%s295 + $0x1f8] sm:$0xf]
        %v495 = vld [vmem:[%s295 + $0x1fc] sm:$0xf]
        %v496 = vld [vmem:[%s295 + $0x200] sm:$0xf]
        %v497 = vld [vmem:[%s295 + $0x204] sm:$0xf]
        %v498 = vld [vmem:[%s295 + $0x208] sm:$0xf]
        %v499 = vld [vmem:[%s295 + $0x20c] sm:$0xf]
        %v500 = vld [vmem:[%s295 + $0x210] sm:$0xf]
        %v501 = vld [vmem:[%s295 + $0x214] sm:$0xf]
        %v502 = vld [vmem:[%s295 + $0x218] sm:$0xf]
        %v503 = vld [vmem:[%s295 + $0x21c] sm:$0xf]
        %v504 = vld [vmem:[%s295 + $0x220] sm:$0xf]
        %v505 = vld [vmem:[%s295 + $0x224] sm:$0xf]
        %v506 = vld [vmem:[%s295 + $0x228] sm:$0xf]
        %v507 = vld [vmem:[%s295 + $0x22c] sm:$0xf]
        %v508 = vld [vmem:[%s295 + $0x230] sm:$0xf]
        %v509 = vld [vmem:[%s295 + $0x234] sm:$0xf]
        %v510 = vld [vmem:[%s295 + $0x238] sm:$0xf]
        %v511 = vld [vmem:[%s295 + $0x23c] sm:$0xf]
        %v512 = vld [vmem:[%s295 + $0x240] sm:$0xf]
        %v513 = vld [vmem:[%s295 + $0x244] sm:$0xf]
        %v514 = vld [vmem:[%s295 + $0x248] sm:$0xf]
        %v515 = vld [vmem:[%s295 + $0x24c] sm:$0xf]
        %v516 = vld [vmem:[%s295 + $0x250] sm:$0xf]
        %v517 = vld [vmem:[%s295 + $0x254] sm:$0xf]
        %v518 = vld [vmem:[%s295 + $0x258] sm:$0xf]
        %v519 = vld [vmem:[%s295 + $0x25c] sm:$0xf]
        %v520 = vld [vmem:[%s295 + $0x260] sm:$0xf]
        %v521 = vld [vmem:[%s295 + $0x264] sm:$0xf]
        %v522 = vld [vmem:[%s295 + $0x268] sm:$0xf]
        %v523 = vld [vmem:[%s295 + $0x26c] sm:$0xf]
        %v524 = vld [vmem:[%s295 + $0x270] sm:$0xf]
        %v525 = vld [vmem:[%s295 + $0x274] sm:$0xf]
        %v526 = vld [vmem:[%s295 + $0x278] sm:$0xf]
        %v527 = vld [vmem:[%s295 + $0x27c] sm:$0xf]
        %v528 = vld [vmem:[%s295 + $0x280] sm:$0xf]
        %v529 = vld [vmem:[%s295 + $0x284] sm:$0xf]
        %v530 = vld [vmem:[%s295 + $0x288] sm:$0xf]
        %v531 = vld [vmem:[%s295 + $0x28c] sm:$0xf]
        %v532 = vld [vmem:[%s295 + $0x290] sm:$0xf]
        %v533 = vld [vmem:[%s295 + $0x294] sm:$0xf]
        %v534 = vld [vmem:[%s295 + $0x298] sm:$0xf]
        %v535 = vld [vmem:[%s295 + $0x29c] sm:$0xf]
        %v536 = vld [vmem:[%s295 + $0x2a0] sm:$0xf]
        %v537 = vld [vmem:[%s295 + $0x2a4] sm:$0xf]
        %v538 = vld [vmem:[%s295 + $0x2a8] sm:$0xf]
        %v539 = vld [vmem:[%s295 + $0x2ac] sm:$0xf]
        %v540 = vld [vmem:[%s295 + $0x2b0] sm:$0xf]
        %v541 = vld [vmem:[%s295 + $0x2b4] sm:$0xf]
        %v542 = vld [vmem:[%s295 + $0x2b8] sm:$0xf]
        %v543 = vld [vmem:[%s295 + $0x2bc] sm:$0xf]
        %v544 = vld [vmem:[%s295 + $0x2c0] sm:$0xf]
        %v545 = vld [vmem:[%s295 + $0x2c4] sm:$0xf]
        %v546 = vld [vmem:[%s295 + $0x2c8] sm:$0xf]
        %v547 = vld [vmem:[%s295 + $0x2cc] sm:$0xf]
        %v548 = vld [vmem:[%s295 + $0x2d0] sm:$0xf]
        %v549 = vld [vmem:[%s295 + $0x2d4] sm:$0xf]
        %v550 = vld [vmem:[%s295 + $0x2d8] sm:$0xf]
        %v551 = vld [vmem:[%s295 + $0x2dc] sm:$0xf]
        %v552 = vld [vmem:[%s295 + $0x2e0] sm:$0xf]
        %v553 = vld [vmem:[%s295 + $0x2e4] sm:$0xf]
        %v554 = vld [vmem:[%s295 + $0x2e8] sm:$0xf]
        %v555 = vld [vmem:[%s295 + $0x2ec] sm:$0xf]
        %v556 = vld [vmem:[%s295 + $0x2f0] sm:$0xf]
        %v557 = vld [vmem:[%s295 + $0x2f4] sm:$0xf]
        %v558 = vld [vmem:[%s295 + $0x2f8] sm:$0xf]
        %v559 = vld [vmem:[%s295 + $0x2fc] sm:$0xf]
        %v560 = vld [vmem:[%s295 + $0x300] sm:$0xf]
        %v561 = vld [vmem:[%s295 + $0x304] sm:$0xf]
        %v562 = vld [vmem:[%s295 + $0x308] sm:$0xf]
        %v563 = vld [vmem:[%s295 + $0x30c] sm:$0xf]
        %v564 = vld [vmem:[%s295 + $0x310] sm:$0xf]
        %v565 = vld [vmem:[%s295 + $0x314] sm:$0xf]
        %v566 = vld [vmem:[%s295 + $0x318] sm:$0xf]
        %v567 = vld [vmem:[%s295 + $0x31c] sm:$0xf]
        %v568 = vld [vmem:[%s295 + $0x320] sm:$0xf]
        %v569 = vld [vmem:[%s295 + $0x324] sm:$0xf]
        %v570 = vld [vmem:[%s295 + $0x328] sm:$0xf]
        %v571 = vld [vmem:[%s295 + $0x32c] sm:$0xf]
        %v572 = vld [vmem:[%s295 + $0x330] sm:$0xf]
        %v573 = vld [vmem:[%s295 + $0x334] sm:$0xf]
        %v574 = vld [vmem:[%s295 + $0x338] sm:$0xf]
        %v575 = vld [vmem:[%s295 + $0x33c] sm:$0xf]
        %v576 = vld [vmem:[%s295 + $0x340] sm:$0xf]
        %v577 = vld [vmem:[%s295 + $0x344] sm:$0xf]
        %v578 = vld [vmem:[%s295 + $0x348] sm:$0xf]
        %v579 = vld [vmem:[%s295 + $0x34c] sm:$0xf]
        %v580 = vld [vmem:[%s295 + $0x350] sm:$0xf]
        %v581 = vld [vmem:[%s295 + $0x354] sm:$0xf]
        %v582 = vld [vmem:[%s295 + $0x358] sm:$0xf]
        %v583 = vld [vmem:[%s295 + $0x35c] sm:$0xf]
        %v584 = vld [vmem:[%s295 + $0x360] sm:$0xf]
        %v585 = vld [vmem:[%s295 + $0x364] sm:$0xf]
        %v586 = vld [vmem:[%s295 + $0x368] sm:$0xf]
        %v587 = vld [vmem:[%s295 + $0x36c] sm:$0xf]
        %v588 = vld [vmem:[%s295 + $0x370] sm:$0xf]
        %v589 = vld [vmem:[%s295 + $0x374] sm:$0xf]
        %v590 = vld [vmem:[%s295 + $0x378] sm:$0xf]
        %v591 = vld [vmem:[%s295 + $0x37c] sm:$0xf]
        %v592 = vld [vmem:[%s295 + $0x380] sm:$0xf]
        %v593 = vld [vmem:[%s295 + $0x384] sm:$0xf]
        %v594 = vld [vmem:[%s295 + $0x388] sm:$0xf]
        %v595 = vld [vmem:[%s295 + $0x38c] sm:$0xf]
        %v596 = vld [vmem:[%s295 + $0x390] sm:$0xf]
        %v597 = vld [vmem:[%s295 + $0x394] sm:$0xf]
        %v598 = vld [vmem:[%s295 + $0x398] sm:$0xf]
        %v599 = vld [vmem:[%s295 + $0x39c] sm:$0xf]
        %v600 = vld [vmem:[%s295 + $0x3a0] sm:$0xf]
        %v601 = vld [vmem:[%s295 + $0x3a4] sm:$0xf]
        %v602 = vld [vmem:[%s295 + $0x3a8] sm:$0xf]
        %v603 = vld [vmem:[%s295 + $0x3ac] sm:$0xf]
        %v604 = vld [vmem:[%s295 + $0x3b0] sm:$0xf]
        %v605 = vld [vmem:[%s295 + $0x3b4] sm:$0xf]
        %v606 = vld [vmem:[%s295 + $0x3b8] sm:$0xf]
        %v607 = vld [vmem:[%s295 + $0x3bc] sm:$0xf]
        %v608 = vld [vmem:[%s295 + $0x3c0] sm:$0xf]
        %v609 = vld [vmem:[%s295 + $0x3c4] sm:$0xf]
        %v610 = vld [vmem:[%s295 + $0x3c8] sm:$0xf]
        %v611 = vld [vmem:[%s295 + $0x3cc] sm:$0xf]
        %v612 = vld [vmem:[%s295 + $0x3d0] sm:$0xf]
        %v613 = vld [vmem:[%s295 + $0x3d4] sm:$0xf]
        %v614 = vld [vmem:[%s295 + $0x3d8] sm:$0xf]
        %v615 = vld [vmem:[%s295 + $0x3dc] sm:$0xf]
        %v616 = vld [vmem:[%s295 + $0x3e0] sm:$0xf]
        %v617 = vld [vmem:[%s295 + $0x3e4] sm:$0xf]
        %v618 = vld [vmem:[%s295 + $0x3e8] sm:$0xf]
        %v619 = vld [vmem:[%s295 + $0x3ec] sm:$0xf]
        %v620 = vld [vmem:[%s295 + $0x3f0] sm:$0xf]
        %v621 = vld [vmem:[%s295 + $0x3f4] sm:$0xf]
        %v622 = vld [vmem:[%s295 + $0x3f8] sm:$0xf]
        %v623 = vld [vmem:[%s295 + $0x3fc] sm:$0xf]
        %v624 = vld [vmem:[%s295 + $0x400] sm:$0xf]
        %v625 = vld [vmem:[%s295 + $0x404] sm:$0xf]
        %v626 = vld [vmem:[%s295 + $0x408] sm:$0xf]
        %v627 = vld [vmem:[%s295 + $0x40c] sm:$0xf]
        %v628 = vld [vmem:[%s295 + $0x410] sm:$0xf]
        %v629 = vld [vmem:[%s295 + $0x414] sm:$0xf]
        %v630 = vld [vmem:[%s295 + $0x418] sm:$0xf]
        %v631 = vld [vmem:[%s295 + $0x41c] sm:$0xf]
        %v632 = vld [vmem:[%s295 + $0x420] sm:$0xf]
        %v633 = vld [vmem:[%s295 + $0x424] sm:$0xf]
        %v634 = vld [vmem:[%s295 + $0x428] sm:$0xf]
        %v635 = vld [vmem:[%s295 + $0x42c] sm:$0xf]
        %v636 = vld [vmem:[%s295 + $0x430] sm:$0xf]
        %v637 = vld [vmem:[%s295 + $0x434] sm:$0xf]
        %v638 = vld [vmem:[%s295 + $0x438] sm:$0xf]
        %v639 = vld [vmem:[%s295 + $0x43c] sm:$0xf]
        %v640 = vld [vmem:[%s295 + $0x440] sm:$0xf]
        %v641 = vld [vmem:[%s295 + $0x444] sm:$0xf]
        %v642 = vld [vmem:[%s295 + $0x448] sm:$0xf]
        %v643 = vld [vmem:[%s295 + $0x44c] sm:$0xf]
        %v644 = vld [vmem:[%s295 + $0x450] sm:$0xf]
        %v645 = vld [vmem:[%s295 + $0x454] sm:$0xf]
        %v646 = vld [vmem:[%s295 + $0x458] sm:$0xf]
        %v647 = vld [vmem:[%s295 + $0x45c] sm:$0xf]
        %v648 = vld [vmem:[%s295 + $0x460] sm:$0xf]
        %v649 = vld [vmem:[%s295 + $0x464] sm:$0xf]
        %v650 = vld [vmem:[%s295 + $0x468] sm:$0xf]
        %v651 = vld [vmem:[%s295 + $0x46c] sm:$0xf]
        %v652 = vld [vmem:[%s295 + $0x470] sm:$0xf]
        %v653 = vld [vmem:[%s295 + $0x474] sm:$0xf]
        %v654 = vld [vmem:[%s295 + $0x478] sm:$0xf]
        %v655 = vld [vmem:[%s295 + $0x47c] sm:$0xf]
        %v656 = vld [vmem:[%s295 + $0x480] sm:$0xf]
        %v657 = vld [vmem:[%s295 + $0x484] sm:$0xf]
        %v658 = vld [vmem:[%s295 + $0x488] sm:$0xf]
        %v659 = vld [vmem:[%s295 + $0x48c] sm:$0xf]
        %v660 = vld [vmem:[%s295 + $0x490] sm:$0xf]
        %v661 = vld [vmem:[%s295 + $0x494] sm:$0xf]
        %v662 = vld [vmem:[%s295 + $0x498] sm:$0xf]
        %v663 = vld [vmem:[%s295 + $0x49c] sm:$0xf]
        %v664 = vld [vmem:[%s295 + $0x4a0] sm:$0xf]
        %v665 = vld [vmem:[%s295 + $0x4a4] sm:$0xf]
        %v666 = vld [vmem:[%s295 + $0x4a8] sm:$0xf]
        %v667 = vld [vmem:[%s295 + $0x4ac] sm:$0xf]
        %v668 = vld [vmem:[%s295 + $0x4b0] sm:$0xf]
        %v669 = vld [vmem:[%s295 + $0x4b4] sm:$0xf]
        %v670 = vld [vmem:[%s295 + $0x4b8] sm:$0xf]
        %v671 = vld [vmem:[%s295 + $0x4bc] sm:$0xf]
        %v672 = vld [vmem:[%s295 + $0x4c0] sm:$0xf]
        %v673 = vld [vmem:[%s295 + $0x4c4] sm:$0xf]
        %v674 = vld [vmem:[%s295 + $0x4c8] sm:$0xf]
        %v675 = vld [vmem:[%s295 + $0x4cc] sm:$0xf]
        %v676 = vld [vmem:[%s295 + $0x4d0] sm:$0xf]
        %v677 = vld [vmem:[%s295 + $0x4d4] sm:$0xf]
        %v678 = vld [vmem:[%s295 + $0x4d8] sm:$0xf]
        %v679 = vld [vmem:[%s295 + $0x4dc] sm:$0xf]
        %v680 = vld [vmem:[%s295 + $0x4e0] sm:$0xf]
        %v681 = vld [vmem:[%s295 + $0x4e4] sm:$0xf]
        %v682 = vld [vmem:[%s295 + $0x4e8] sm:$0xf]
        %v683 = vld [vmem:[%s295 + $0x4ec] sm:$0xf]
        %v684 = vld [vmem:[%s295 + $0x4f0] sm:$0xf]
        %v685 = vld [vmem:[%s295 + $0x4f4] sm:$0xf]
        %v686 = vld [vmem:[%s295 + $0x4f8] sm:$0xf]
        %v687 = vld [vmem:[%s295 + $0x4fc] sm:$0xf]
        %v688 = vld [vmem:[%s295 + $0x500] sm:$0xf]
        %v689 = vld [vmem:[%s295 + $0x504] sm:$0xf]
        %v690 = vld [vmem:[%s295 + $0x508] sm:$0xf]
        %v691 = vld [vmem:[%s295 + $0x50c] sm:$0xf]
        %v692 = vld [vmem:[%s295 + $0x510] sm:$0xf]
        %v693 = vld [vmem:[%s295 + $0x514] sm:$0xf]
        %v694 = vld [vmem:[%s295 + $0x518] sm:$0xf]
        %v695 = vld [vmem:[%s295 + $0x51c] sm:$0xf]
        %v696 = vld [vmem:[%s295 + $0x520] sm:$0xf]
        %v697 = vld [vmem:[%s295 + $0x524] sm:$0xf]
        %v698 = vld [vmem:[%s295 + $0x528] sm:$0xf]
        %v699 = vld [vmem:[%s295 + $0x52c] sm:$0xf]
        %v700 = vld [vmem:[%s295 + $0x530] sm:$0xf]
        %v701 = vld [vmem:[%s295 + $0x534] sm:$0xf]
        %v702 = vld [vmem:[%s295 + $0x538] sm:$0xf]
        %v703 = vld [vmem:[%s295 + $0x53c] sm:$0xf]
        %v704 = vld [vmem:[%s295 + $0x540] sm:$0xf]
        %v705 = vld [vmem:[%s295 + $0x544] sm:$0xf]
        %v706 = vld [vmem:[%s295 + $0x548] sm:$0xf]
        %v707 = vld [vmem:[%s295 + $0x54c] sm:$0xf]
        %v708 = vld [vmem:[%s295 + $0x550] sm:$0xf]
        %v709 = vld [vmem:[%s295 + $0x554] sm:$0xf]
        %v710 = vld [vmem:[%s295 + $0x558] sm:$0xf]
        %v711 = vld [vmem:[%s295 + $0x55c] sm:$0xf]
        %v712 = vld [vmem:[%s295 + $0x560] sm:$0xf]
        %v713 = vld [vmem:[%s295 + $0x564] sm:$0xf]
        %v714 = vld [vmem:[%s295 + $0x568] sm:$0xf]
        %v715 = vld [vmem:[%s295 + $0x56c] sm:$0xf]
        %v716 = vld [vmem:[%s295 + $0x570] sm:$0xf]
        %v717 = vld [vmem:[%s295 + $0x574] sm:$0xf]
        %v718 = vld [vmem:[%s295 + $0x578] sm:$0xf]
        %v719 = vld [vmem:[%s295 + $0x57c] sm:$0xf]
        %v720 = vld [vmem:[%s295 + $0x580] sm:$0xf]
        %v721 = vld [vmem:[%s295 + $0x584] sm:$0xf]
        %v722 = vld [vmem:[%s295 + $0x588] sm:$0xf]
        %v723 = vld [vmem:[%s295 + $0x58c] sm:$0xf]
        %v724 = vld [vmem:[%s295 + $0x590] sm:$0xf]
        %v725 = vld [vmem:[%s295 + $0x594] sm:$0xf]
        %v726 = vld [vmem:[%s295 + $0x598] sm:$0xf]
        %v727 = vld [vmem:[%s295 + $0x59c] sm:$0xf]
        %v728 = vld [vmem:[%s295 + $0x5a0] sm:$0xf]
        %v729 = vld [vmem:[%s295 + $0x5a4] sm:$0xf]
        %v730 = vld [vmem:[%s295 + $0x5a8] sm:$0xf]
        %v731 = vld [vmem:[%s295 + $0x5ac] sm:$0xf]
        %v732 = vld [vmem:[%s295 + $0x5b0] sm:$0xf]
        %v733 = vld [vmem:[%s295 + $0x5b4] sm:$0xf]
        %v734 = vld [vmem:[%s295 + $0x5b8] sm:$0xf]
        %v735 = vld [vmem:[%s295 + $0x5bc] sm:$0xf]
        %v736 = vld [vmem:[%s295 + $0x5c0] sm:$0xf]
        %v737 = vld [vmem:[%s295 + $0x5c4] sm:$0xf]
        %v738 = vld [vmem:[%s295 + $0x5c8] sm:$0xf]
        %v739 = vld [vmem:[%s295 + $0x5cc] sm:$0xf]
        %v740 = vld [vmem:[%s295 + $0x5d0] sm:$0xf]
        %v741 = vld [vmem:[%s295 + $0x5d4] sm:$0xf]
        %v742 = vld [vmem:[%s295 + $0x5d8] sm:$0xf]
        %v743 = vld [vmem:[%s295 + $0x5dc] sm:$0xf]
        %v744 = vld [vmem:[%s295 + $0x5e0] sm:$0xf]
        %v745 = vld [vmem:[%s295 + $0x5e4] sm:$0xf]
        %v746 = vld [vmem:[%s295 + $0x5e8] sm:$0xf]
        %v747 = vld [vmem:[%s295 + $0x5ec] sm:$0xf]
        %v748 = vld [vmem:[%s295 + $0x5f0] sm:$0xf]
        %v749 = vld [vmem:[%s295 + $0x5f4] sm:$0xf]
        %v750 = vld [vmem:[%s295 + $0x5f8] sm:$0xf]
        %v751 = vld [vmem:[%s295 + $0x5fc] sm:$0xf]
        %v752 = vld [vmem:[%s295 + $0x600] sm:$0xf]
        %v753 = vld [vmem:[%s295 + $0x604] sm:$0xf]
        %v754 = vld [vmem:[%s295 + $0x608] sm:$0xf]
        %v755 = vld [vmem:[%s295 + $0x60c] sm:$0xf]
        %v756 = vld [vmem:[%s295 + $0x610] sm:$0xf]
        %v757 = vld [vmem:[%s295 + $0x614] sm:$0xf]
        %v758 = vld [vmem:[%s295 + $0x618] sm:$0xf]
        %v759 = vld [vmem:[%s295 + $0x61c] sm:$0xf]
        %v760 = vld [vmem:[%s295 + $0x620] sm:$0xf]
        %v761 = vld [vmem:[%s295 + $0x624] sm:$0xf]
        %v762 = vld [vmem:[%s295 + $0x628] sm:$0xf]
        %v763 = vld [vmem:[%s295 + $0x62c] sm:$0xf]
        %v764 = vld [vmem:[%s295 + $0x630] sm:$0xf]
        %v765 = vld [vmem:[%s295 + $0x634] sm:$0xf]
        %v766 = vld [vmem:[%s295 + $0x638] sm:$0xf]
        %v767 = vld [vmem:[%s295 + $0x63c] sm:$0xf]
        %v768 = vld [vmem:[%s295 + $0x640] sm:$0xf]
        %v769 = vld [vmem:[%s295 + $0x644] sm:$0xf]
        %v770 = vld [vmem:[%s295 + $0x648] sm:$0xf]
        %v771 = vld [vmem:[%s295 + $0x64c] sm:$0xf]
        %v772 = vld [vmem:[%s295 + $0x650] sm:$0xf]
        %v773 = vld [vmem:[%s295 + $0x654] sm:$0xf]
        %v774 = vld [vmem:[%s295 + $0x658] sm:$0xf]
        %v775 = vld [vmem:[%s295 + $0x65c] sm:$0xf]
        %v776 = vld [vmem:[%s295 + $0x660] sm:$0xf]
        %v777 = vld [vmem:[%s295 + $0x664] sm:$0xf]
        %v778 = vld [vmem:[%s295 + $0x668] sm:$0xf]
        %v779 = vld [vmem:[%s295 + $0x66c] sm:$0xf]
        %v780 = vld [vmem:[%s295 + $0x670] sm:$0xf]
        %v781 = vld [vmem:[%s295 + $0x674] sm:$0xf]
        %v782 = vld [vmem:[%s295 + $0x678] sm:$0xf]
        %v783 = vld [vmem:[%s295 + $0x67c] sm:$0xf]
        %v784 = vld [vmem:[%s295 + $0x680] sm:$0xf]
        %v785 = vld [vmem:[%s295 + $0x684] sm:$0xf]
        %v786 = vld [vmem:[%s295 + $0x688] sm:$0xf]
        %v787 = vld [vmem:[%s295 + $0x68c] sm:$0xf]
        %v788 = vld [vmem:[%s295 + $0x690] sm:$0xf]
        %v789 = vld [vmem:[%s295 + $0x694] sm:$0xf]
        %v790 = vld [vmem:[%s295 + $0x698] sm:$0xf]
        %v791 = vld [vmem:[%s295 + $0x69c] sm:$0xf]
        %v792 = vld [vmem:[%s295 + $0x6a0] sm:$0xf]
        %v793 = vld [vmem:[%s295 + $0x6a4] sm:$0xf]
        %v794 = vld [vmem:[%s295 + $0x6a8] sm:$0xf]
        %v795 = vld [vmem:[%s295 + $0x6ac] sm:$0xf]
        %v796 = vld [vmem:[%s295 + $0x6b0] sm:$0xf]
        %v797 = vld [vmem:[%s295 + $0x6b4] sm:$0xf]
        %v798 = vld [vmem:[%s295 + $0x6b8] sm:$0xf]
        %v799 = vld [vmem:[%s295 + $0x6bc] sm:$0xf]
        %v800 = vld [vmem:[%s295 + $0x6c0] sm:$0xf]
        %v801 = vld [vmem:[%s295 + $0x6c4] sm:$0xf]
        %v802 = vld [vmem:[%s295 + $0x6c8] sm:$0xf]
        %v803 = vld [vmem:[%s295 + $0x6cc] sm:$0xf]
        %v804 = vld [vmem:[%s295 + $0x6d0] sm:$0xf]
        %v805 = vld [vmem:[%s295 + $0x6d4] sm:$0xf]
        %v806 = vld [vmem:[%s295 + $0x6d8] sm:$0xf]
        %v807 = vld [vmem:[%s295 + $0x6dc] sm:$0xf]
        %v808 = vld [vmem:[%s295 + $0x6e0] sm:$0xf]
        %v809 = vld [vmem:[%s295 + $0x6e4] sm:$0xf]
        %v810 = vld [vmem:[%s295 + $0x6e8] sm:$0xf]
        %v811 = vld [vmem:[%s295 + $0x6ec] sm:$0xf]
        %v812 = vld [vmem:[%s295 + $0x6f0] sm:$0xf]
        %v813 = vld [vmem:[%s295 + $0x6f4] sm:$0xf]
        %v814 = vld [vmem:[%s295 + $0x6f8] sm:$0xf]
        %v815 = vld [vmem:[%s295 + $0x6fc] sm:$0xf]
        %v816 = vld [vmem:[%s295 + $0x700] sm:$0xf]
        %v817 = vld [vmem:[%s295 + $0x704] sm:$0xf]
        %v818 = vld [vmem:[%s295 + $0x708] sm:$0xf]
        %v819 = vld [vmem:[%s295 + $0x70c] sm:$0xf]
        %v820 = vld [vmem:[%s295 + $0x710] sm:$0xf]
        %v821 = vld [vmem:[%s295 + $0x714] sm:$0xf]
        %v822 = vld [vmem:[%s295 + $0x718] sm:$0xf]
        %v823 = vld [vmem:[%s295 + $0x71c] sm:$0xf]
        %v824 = vld [vmem:[%s295 + $0x720] sm:$0xf]
        %v825 = vld [vmem:[%s295 + $0x724] sm:$0xf]
        %v826 = vld [vmem:[%s295 + $0x728] sm:$0xf]
        %v827 = vld [vmem:[%s295 + $0x72c] sm:$0xf]
        %v828 = vld [vmem:[%s295 + $0x730] sm:$0xf]
        %v829 = vld [vmem:[%s295 + $0x734] sm:$0xf]
        %v830 = vld [vmem:[%s295 + $0x738] sm:$0xf]
        %v831 = vld [vmem:[%s295 + $0x73c] sm:$0xf]
        %v832 = vld [vmem:[%s295 + $0x740] sm:$0xf]
        %v833 = vld [vmem:[%s295 + $0x744] sm:$0xf]
        %v834 = vld [vmem:[%s295 + $0x748] sm:$0xf]
        %v835 = vld [vmem:[%s295 + $0x74c] sm:$0xf]
        %v836 = vld [vmem:[%s295 + $0x750] sm:$0xf]
        %v837 = vld [vmem:[%s295 + $0x754] sm:$0xf]
        %v838 = vld [vmem:[%s295 + $0x758] sm:$0xf]
        %v839 = vld [vmem:[%s295 + $0x75c] sm:$0xf]
        %v840 = vld [vmem:[%s295 + $0x760] sm:$0xf]
        %v841 = vld [vmem:[%s295 + $0x764] sm:$0xf]
        %v842 = vld [vmem:[%s295 + $0x768] sm:$0xf]
        %v843 = vld [vmem:[%s295 + $0x76c] sm:$0xf]
        %v844 = vld [vmem:[%s295 + $0x770] sm:$0xf]
        %v845 = vld [vmem:[%s295 + $0x774] sm:$0xf]
        %v846 = vld [vmem:[%s295 + $0x778] sm:$0xf]
        %v847 = vld [vmem:[%s295 + $0x77c] sm:$0xf]
        %v848 = vld [vmem:[%s295 + $0x780] sm:$0xf]
        %v849 = vld [vmem:[%s295 + $0x784] sm:$0xf]
        %v850 = vld [vmem:[%s295 + $0x788] sm:$0xf]
        %v851 = vld [vmem:[%s295 + $0x78c] sm:$0xf]
        %v852 = vld [vmem:[%s295 + $0x790] sm:$0xf]
        %v853 = vld [vmem:[%s295 + $0x794] sm:$0xf]
        %v854 = vld [vmem:[%s295 + $0x798] sm:$0xf]
        %v855 = vld [vmem:[%s295 + $0x79c] sm:$0xf]
        %v856 = vld [vmem:[%s295 + $0x7a0] sm:$0xf]
        %v857 = vld [vmem:[%s295 + $0x7a4] sm:$0xf]
        %v858 = vld [vmem:[%s295 + $0x7a8] sm:$0xf]
        %v859 = vld [vmem:[%s295 + $0x7ac] sm:$0xf]
        %v860 = vld [vmem:[%s295 + $0x7b0] sm:$0xf]
        %v861 = vld [vmem:[%s295 + $0x7b4] sm:$0xf]
        %v862 = vld [vmem:[%s295 + $0x7b8] sm:$0xf]
        %v863 = vld [vmem:[%s295 + $0x7bc] sm:$0xf]
        %v864 = vld [vmem:[%s295 + $0x7c0] sm:$0xf]
        %v865 = vld [vmem:[%s295 + $0x7c4] sm:$0xf]
        %v866 = vld [vmem:[%s295 + $0x7c8] sm:$0xf]
        %v867 = vld [vmem:[%s295 + $0x7cc] sm:$0xf]
        %v868 = vld [vmem:[%s295 + $0x7d0] sm:$0xf]
        %v869 = vld [vmem:[%s295 + $0x7d4] sm:$0xf]
        %v870 = vld [vmem:[%s295 + $0x7d8] sm:$0xf]
        %v871 = vld [vmem:[%s295 + $0x7dc] sm:$0xf]
        %v872 = vld [vmem:[%s295 + $0x7e0] sm:$0xf]
        %v873 = vld [vmem:[%s295 + $0x7e4] sm:$0xf]
        %v874 = vld [vmem:[%s295 + $0x7e8] sm:$0xf]
        %v875 = vld [vmem:[%s295 + $0x7ec] sm:$0xf]
        %v876 = vld [vmem:[%s295 + $0x7f0] sm:$0xf]
        %v877 = vld [vmem:[%s295 + $0x7f4] sm:$0xf]
        %v878 = vld [vmem:[%s295 + $0x7f8] sm:$0xf]
        %v879 = vld [vmem:[%s295 + $0x7fc] sm:$0xf]
        %v896 = vunpack.c.l.b16 %v352
        %v897 = vunpack.c.h.b16 %v352
        %v898 = vunpack.c.l.b16 %v353
        %v899 = vunpack.c.h.b16 %v353
        %v900 = vunpack.c.l.b16 %v354
        %v901 = vunpack.c.h.b16 %v354
        %v902 = vunpack.c.l.b16 %v355
        %v903 = vunpack.c.h.b16 %v355
        %v904 = vunpack.c.l.b16 %v356
        %v905 = vunpack.c.h.b16 %v356
        %v906 = vunpack.c.l.b16 %v357
        %v907 = vunpack.c.h.b16 %v357
        %v908 = vunpack.c.l.b16 %v358
        %v909 = vunpack.c.h.b16 %v358
        %v910 = vunpack.c.l.b16 %v359
        %v911 = vunpack.c.h.b16 %v359
        %v912 = vunpack.c.l.b16 %v360
        %v913 = vunpack.c.h.b16 %v360
        %v914 = vunpack.c.l.b16 %v361
        %v915 = vunpack.c.h.b16 %v361
        %v916 = vunpack.c.l.b16 %v362
        %v917 = vunpack.c.h.b16 %v362
        %v918 = vunpack.c.l.b16 %v363
        %v919 = vunpack.c.h.b16 %v363
        %v920 = vunpack.c.l.b16 %v364
        %v921 = vunpack.c.h.b16 %v364
        %v922 = vunpack.c.l.b16 %v365
        %v923 = vunpack.c.h.b16 %v365
        %v924 = vunpack.c.l.b16 %v366
        %v925 = vunpack.c.h.b16 %v366
        %v926 = vunpack.c.l.b16 %v367
        %v927 = vunpack.c.h.b16 %v367
        %v928 = vpack.c.b16 %v896, %v896
        %v929 = vpack.c.b16 %v897, %v897
        %v930 = vpack.c.b16 %v898, %v898
        %v931 = vpack.c.b16 %v899, %v899
        %v932 = vpack.c.b16 %v900, %v900
        %v933 = vpack.c.b16 %v901, %v901
        %v934 = vpack.c.b16 %v902, %v902
        %v935 = vpack.c.b16 %v903, %v903
        %v936 = vpack.c.b16 %v904, %v904
        %v937 = vpack.c.b16 %v905, %v905
        %v938 = vpack.c.b16 %v906, %v906
        %v939 = vpack.c.b16 %v907, %v907
        %v940 = vpack.c.b16 %v908, %v908
        %v941 = vpack.c.b16 %v909, %v909
        %v942 = vpack.c.b16 %v910, %v910
        %v943 = vpack.c.b16 %v911, %v911
        %v944 = vpack.c.b16 %v912, %v912
        %v945 = vpack.c.b16 %v913, %v913
        %v946 = vpack.c.b16 %v914, %v914
        %v947 = vpack.c.b16 %v915, %v915
        %v948 = vpack.c.b16 %v916, %v916
        %v949 = vpack.c.b16 %v917, %v917
        %v950 = vpack.c.b16 %v918, %v918
        %v951 = vpack.c.b16 %v919, %v919
        %v952 = vpack.c.b16 %v920, %v920
        %v953 = vpack.c.b16 %v921, %v921
        %v954 = vpack.c.b16 %v922, %v922
        %v955 = vpack.c.b16 %v923, %v923
        %v956 = vpack.c.b16 %v924, %v924
        %v957 = vpack.c.b16 %v925, %v925
        %v958 = vpack.c.b16 %v926, %v926
        %v959 = vpack.c.b16 %v927, %v927
        %v1504 = vunpack.c.l.b16 %v368
        %v1505 = vunpack.c.l.b16 %v369
        %v1506 = vunpack.c.l.b16 %v370
        %v1507 = vunpack.c.l.b16 %v371
        %v1508 = vunpack.c.l.b16 %v372
        %v1509 = vunpack.c.l.b16 %v373
        %v1510 = vunpack.c.l.b16 %v374
        %v1511 = vunpack.c.l.b16 %v375
        %v1512 = vunpack.c.l.b16 %v376
        %v1513 = vunpack.c.l.b16 %v377
        %v1514 = vunpack.c.l.b16 %v378
        %v1515 = vunpack.c.l.b16 %v379
        %v1516 = vunpack.c.l.b16 %v380
        %v1517 = vunpack.c.l.b16 %v381
        %v1518 = vunpack.c.l.b16 %v382
        %v1519 = vunpack.c.l.b16 %v383
        %v1520 = vunpack.c.l.b16 %v384
        %v1521 = vunpack.c.l.b16 %v385
        %v1522 = vunpack.c.l.b16 %v386
        %v1523 = vunpack.c.l.b16 %v387
        %v1524 = vunpack.c.l.b16 %v388
        %v1525 = vunpack.c.l.b16 %v389
        %v1526 = vunpack.c.l.b16 %v390
        %v1527 = vunpack.c.l.b16 %v391
        %v1528 = vunpack.c.l.b16 %v392
        %v1529 = vunpack.c.l.b16 %v393
        %v1530 = vunpack.c.l.b16 %v394
        %v1531 = vunpack.c.l.b16 %v395
        %v1532 = vunpack.c.l.b16 %v396
        %v1533 = vunpack.c.l.b16 %v397
        %v1534 = vunpack.c.l.b16 %v398
        %v1535 = vunpack.c.l.b16 %v399
        %v1536 = vunpack.c.l.b16 %v400
        %v1537 = vunpack.c.l.b16 %v401
        %v1538 = vunpack.c.l.b16 %v402
        %v1539 = vunpack.c.l.b16 %v403
        %v1540 = vunpack.c.l.b16 %v404
        %v1541 = vunpack.c.l.b16 %v405
        %v1542 = vunpack.c.l.b16 %v406
        %v1543 = vunpack.c.l.b16 %v407
        %v1544 = vunpack.c.l.b16 %v408
        %v1545 = vunpack.c.l.b16 %v409
        %v1546 = vunpack.c.l.b16 %v410
        %v1547 = vunpack.c.l.b16 %v411
        %v1548 = vunpack.c.l.b16 %v412
        %v1549 = vunpack.c.l.b16 %v413
        %v1550 = vunpack.c.l.b16 %v414
        %v1551 = vunpack.c.l.b16 %v415
        %v1552 = vunpack.c.l.b16 %v416
        %v1553 = vunpack.c.l.b16 %v417
        %v1554 = vunpack.c.l.b16 %v418
        %v1555 = vunpack.c.l.b16 %v419
        %v1556 = vunpack.c.l.b16 %v420
        %v1557 = vunpack.c.l.b16 %v421
        %v1558 = vunpack.c.l.b16 %v422
        %v1559 = vunpack.c.l.b16 %v423
        %v1560 = vunpack.c.l.b16 %v424
        %v1561 = vunpack.c.l.b16 %v425
        %v1562 = vunpack.c.l.b16 %v426
        %v1563 = vunpack.c.l.b16 %v427
        %v1564 = vunpack.c.l.b16 %v428
        %v1565 = vunpack.c.l.b16 %v429
        %v1566 = vunpack.c.l.b16 %v430
        %v1567 = vunpack.c.l.b16 %v431
        %v1568 = vunpack.c.l.b16 %v432
        %v1569 = vunpack.c.l.b16 %v433
        %v1570 = vunpack.c.l.b16 %v434
        %v1571 = vunpack.c.l.b16 %v435
        %v1572 = vunpack.c.l.b16 %v436
        %v1573 = vunpack.c.l.b16 %v437
        %v1574 = vunpack.c.l.b16 %v438
        %v1575 = vunpack.c.l.b16 %v439
        %v1576 = vunpack.c.l.b16 %v440
        %v1577 = vunpack.c.l.b16 %v441
        %v1578 = vunpack.c.l.b16 %v442
        %v1579 = vunpack.c.l.b16 %v443
        %v1580 = vunpack.c.l.b16 %v444
        %v1581 = vunpack.c.l.b16 %v445
        %v1582 = vunpack.c.l.b16 %v446
        %v1583 = vunpack.c.l.b16 %v447
        %v1584 = vunpack.c.l.b16 %v448
        %v1585 = vunpack.c.l.b16 %v449
        %v1586 = vunpack.c.l.b16 %v450
        %v1587 = vunpack.c.l.b16 %v451
        %v1588 = vunpack.c.l.b16 %v452
        %v1589 = vunpack.c.l.b16 %v453
        %v1590 = vunpack.c.l.b16 %v454
        %v1591 = vunpack.c.l.b16 %v455
        %v1592 = vunpack.c.l.b16 %v456
        %v1593 = vunpack.c.l.b16 %v457
        %v1594 = vunpack.c.l.b16 %v458
        %v1595 = vunpack.c.l.b16 %v459
        %v1596 = vunpack.c.l.b16 %v460
        %v1597 = vunpack.c.l.b16 %v461
        %v1598 = vunpack.c.l.b16 %v462
        %v1599 = vunpack.c.l.b16 %v463
        %v1600 = vunpack.c.l.b16 %v464
        %v1601 = vunpack.c.l.b16 %v465
        %v1602 = vunpack.c.l.b16 %v466
        %v1603 = vunpack.c.l.b16 %v467
        %v1604 = vunpack.c.l.b16 %v468
        %v1605 = vunpack.c.l.b16 %v469
        %v1606 = vunpack.c.l.b16 %v470
        %v1607 = vunpack.c.l.b16 %v471
        %v1608 = vunpack.c.l.b16 %v472
        %v1609 = vunpack.c.l.b16 %v473
        %v1610 = vunpack.c.l.b16 %v474
        %v1611 = vunpack.c.l.b16 %v475
        %v1612 = vunpack.c.l.b16 %v476
        %v1613 = vunpack.c.l.b16 %v477
        %v1614 = vunpack.c.l.b16 %v478
        %v1615 = vunpack.c.l.b16 %v479
        %v1616 = vunpack.c.l.b16 %v480
        %v1617 = vunpack.c.l.b16 %v481
        %v1618 = vunpack.c.l.b16 %v482
        %v1619 = vunpack.c.l.b16 %v483
        %v1620 = vunpack.c.l.b16 %v484
        %v1621 = vunpack.c.l.b16 %v485
        %v1622 = vunpack.c.l.b16 %v486
        %v1623 = vunpack.c.l.b16 %v487
        %v1624 = vunpack.c.l.b16 %v488
        %v1625 = vunpack.c.l.b16 %v489
        %v1626 = vunpack.c.l.b16 %v490
        %v1627 = vunpack.c.l.b16 %v491
        %v1628 = vunpack.c.l.b16 %v492
        %v1629 = vunpack.c.l.b16 %v493
        %v1630 = vunpack.c.l.b16 %v494
        %v1631 = vunpack.c.l.b16 %v495
        %v1632 = vunpack.c.l.b16 %v496
        %v1633 = vunpack.c.l.b16 %v497
        %v1634 = vunpack.c.l.b16 %v498
        %v1635 = vunpack.c.l.b16 %v499
        %v1636 = vunpack.c.l.b16 %v500
        %v1637 = vunpack.c.l.b16 %v501
        %v1638 = vunpack.c.l.b16 %v502
        %v1639 = vunpack.c.l.b16 %v503
        %v1640 = vunpack.c.l.b16 %v504
        %v1641 = vunpack.c.l.b16 %v505
        %v1642 = vunpack.c.l.b16 %v506
        %v1643 = vunpack.c.l.b16 %v507
        %v1644 = vunpack.c.l.b16 %v508
        %v1645 = vunpack.c.l.b16 %v509
        %v1646 = vunpack.c.l.b16 %v510
        %v1647 = vunpack.c.l.b16 %v511
        %v1648 = vunpack.c.l.b16 %v512
        %v1649 = vunpack.c.l.b16 %v513
        %v1650 = vunpack.c.l.b16 %v514
        %v1651 = vunpack.c.l.b16 %v515
        %v1652 = vunpack.c.l.b16 %v516
        %v1653 = vunpack.c.l.b16 %v517
        %v1654 = vunpack.c.l.b16 %v518
        %v1655 = vunpack.c.l.b16 %v519
        %v1656 = vunpack.c.l.b16 %v520
        %v1657 = vunpack.c.l.b16 %v521
        %v1658 = vunpack.c.l.b16 %v522
        %v1659 = vunpack.c.l.b16 %v523
        %v1660 = vunpack.c.l.b16 %v524
        %v1661 = vunpack.c.l.b16 %v525
        %v1662 = vunpack.c.l.b16 %v526
        %v1663 = vunpack.c.l.b16 %v527
        %v1664 = vunpack.c.l.b16 %v528
        %v1665 = vunpack.c.l.b16 %v529
        %v1666 = vunpack.c.l.b16 %v530
        %v1667 = vunpack.c.l.b16 %v531
        %v1668 = vunpack.c.l.b16 %v532
        %v1669 = vunpack.c.l.b16 %v533
        %v1670 = vunpack.c.l.b16 %v534
        %v1671 = vunpack.c.l.b16 %v535
        %v1672 = vunpack.c.l.b16 %v536
        %v1673 = vunpack.c.l.b16 %v537
        %v1674 = vunpack.c.l.b16 %v538
        %v1675 = vunpack.c.l.b16 %v539
        %v1676 = vunpack.c.l.b16 %v540
        %v1677 = vunpack.c.l.b16 %v541
        %v1678 = vunpack.c.l.b16 %v542
        %v1679 = vunpack.c.l.b16 %v543
        %v1680 = vunpack.c.l.b16 %v544
        %v1681 = vunpack.c.l.b16 %v545
        %v1682 = vunpack.c.l.b16 %v546
        %v1683 = vunpack.c.l.b16 %v547
        %v1684 = vunpack.c.l.b16 %v548
        %v1685 = vunpack.c.l.b16 %v549
        %v1686 = vunpack.c.l.b16 %v550
        %v1687 = vunpack.c.l.b16 %v551
        %v1688 = vunpack.c.l.b16 %v552
        %v1689 = vunpack.c.l.b16 %v553
        %v1690 = vunpack.c.l.b16 %v554
        %v1691 = vunpack.c.l.b16 %v555
        %v1692 = vunpack.c.l.b16 %v556
        %v1693 = vunpack.c.l.b16 %v557
        %v1694 = vunpack.c.l.b16 %v558
        %v1695 = vunpack.c.l.b16 %v559
        %v1696 = vunpack.c.l.b16 %v560
        %v1697 = vunpack.c.l.b16 %v561
        %v1698 = vunpack.c.l.b16 %v562
        %v1699 = vunpack.c.l.b16 %v563
        %v1700 = vunpack.c.l.b16 %v564
        %v1701 = vunpack.c.l.b16 %v565
        %v1702 = vunpack.c.l.b16 %v566
        %v1703 = vunpack.c.l.b16 %v567
        %v1704 = vunpack.c.l.b16 %v568
        %v1705 = vunpack.c.l.b16 %v569
        %v1706 = vunpack.c.l.b16 %v570
        %v1707 = vunpack.c.l.b16 %v571
        %v1708 = vunpack.c.l.b16 %v572
        %v1709 = vunpack.c.l.b16 %v573
        %v1710 = vunpack.c.l.b16 %v574
        %v1711 = vunpack.c.l.b16 %v575
        %v1712 = vunpack.c.l.b16 %v576
        %v1713 = vunpack.c.l.b16 %v577
        %v1714 = vunpack.c.l.b16 %v578
        %v1715 = vunpack.c.l.b16 %v579
        %v1716 = vunpack.c.l.b16 %v580
        %v1717 = vunpack.c.l.b16 %v581
        %v1718 = vunpack.c.l.b16 %v582
        %v1719 = vunpack.c.l.b16 %v583
        %v1720 = vunpack.c.l.b16 %v584
        %v1721 = vunpack.c.l.b16 %v585
        %v1722 = vunpack.c.l.b16 %v586
        %v1723 = vunpack.c.l.b16 %v587
        %v1724 = vunpack.c.l.b16 %v588
        %v1725 = vunpack.c.l.b16 %v589
        %v1726 = vunpack.c.l.b16 %v590
        %v1727 = vunpack.c.l.b16 %v591
        %v1728 = vunpack.c.l.b16 %v592
        %v1729 = vunpack.c.l.b16 %v593
        %v1730 = vunpack.c.l.b16 %v594
        %v1731 = vunpack.c.l.b16 %v595
        %v1732 = vunpack.c.l.b16 %v596
        %v1733 = vunpack.c.l.b16 %v597
        %v1734 = vunpack.c.l.b16 %v598
        %v1735 = vunpack.c.l.b16 %v599
        %v1736 = vunpack.c.l.b16 %v600
        %v1737 = vunpack.c.l.b16 %v601
        %v1738 = vunpack.c.l.b16 %v602
        %v1739 = vunpack.c.l.b16 %v603
        %v1740 = vunpack.c.l.b16 %v604
        %v1741 = vunpack.c.l.b16 %v605
        %v1742 = vunpack.c.l.b16 %v606
        %v1743 = vunpack.c.l.b16 %v607
        %v1744 = vunpack.c.l.b16 %v608
        %v1745 = vunpack.c.l.b16 %v609
        %v1746 = vunpack.c.l.b16 %v610
        %v1747 = vunpack.c.l.b16 %v611
        %v1748 = vunpack.c.l.b16 %v612
        %v1749 = vunpack.c.l.b16 %v613
        %v1750 = vunpack.c.l.b16 %v614
        %v1751 = vunpack.c.l.b16 %v615
        %v1752 = vunpack.c.l.b16 %v616
        %v1753 = vunpack.c.l.b16 %v617
        %v1754 = vunpack.c.l.b16 %v618
        %v1755 = vunpack.c.l.b16 %v619
        %v1756 = vunpack.c.l.b16 %v620
        %v1757 = vunpack.c.l.b16 %v621
        %v1758 = vunpack.c.l.b16 %v622
        %v1759 = vunpack.c.l.b16 %v623
        %v1760 = vunpack.c.l.b16 %v624
        %v1761 = vunpack.c.l.b16 %v625
        %v1762 = vunpack.c.l.b16 %v626
        %v1763 = vunpack.c.l.b16 %v627
        %v1764 = vunpack.c.l.b16 %v628
        %v1765 = vunpack.c.l.b16 %v629
        %v1766 = vunpack.c.l.b16 %v630
        %v1767 = vunpack.c.l.b16 %v631
        %v1768 = vunpack.c.l.b16 %v632
        %v1769 = vunpack.c.l.b16 %v633
        %v1770 = vunpack.c.l.b16 %v634
        %v1771 = vunpack.c.l.b16 %v635
        %v1772 = vunpack.c.l.b16 %v636
        %v1773 = vunpack.c.l.b16 %v637
        %v1774 = vunpack.c.l.b16 %v638
        %v1775 = vunpack.c.l.b16 %v639
        %v1776 = vunpack.c.l.b16 %v640
        %v1777 = vunpack.c.l.b16 %v641
        %v1778 = vunpack.c.l.b16 %v642
        %v1779 = vunpack.c.l.b16 %v643
        %v1780 = vunpack.c.l.b16 %v644
        %v1781 = vunpack.c.l.b16 %v645
        %v1782 = vunpack.c.l.b16 %v646
        %v1783 = vunpack.c.l.b16 %v647
        %v1784 = vunpack.c.l.b16 %v648
        %v1785 = vunpack.c.l.b16 %v649
        %v1786 = vunpack.c.l.b16 %v650
        %v1787 = vunpack.c.l.b16 %v651
        %v1788 = vunpack.c.l.b16 %v652
        %v1789 = vunpack.c.l.b16 %v653
        %v1790 = vunpack.c.l.b16 %v654
        %v1791 = vunpack.c.l.b16 %v655
        %v1792 = vunpack.c.l.b16 %v656
        %v1793 = vunpack.c.l.b16 %v657
        %v1794 = vunpack.c.l.b16 %v658
        %v1795 = vunpack.c.l.b16 %v659
        %v1796 = vunpack.c.l.b16 %v660
        %v1797 = vunpack.c.l.b16 %v661
        %v1798 = vunpack.c.l.b16 %v662
        %v1799 = vunpack.c.l.b16 %v663
        %v1800 = vunpack.c.l.b16 %v664
        %v1801 = vunpack.c.l.b16 %v665
        %v1802 = vunpack.c.l.b16 %v666
        %v1803 = vunpack.c.l.b16 %v667
        %v1804 = vunpack.c.l.b16 %v668
        %v1805 = vunpack.c.l.b16 %v669
        %v1806 = vunpack.c.l.b16 %v670
        %v1807 = vunpack.c.l.b16 %v671
        %v1808 = vunpack.c.l.b16 %v672
        %v1809 = vunpack.c.l.b16 %v673
        %v1810 = vunpack.c.l.b16 %v674
        %v1811 = vunpack.c.l.b16 %v675
        %v1812 = vunpack.c.l.b16 %v676
        %v1813 = vunpack.c.l.b16 %v677
        %v1814 = vunpack.c.l.b16 %v678
        %v1815 = vunpack.c.l.b16 %v679
        %v1816 = vunpack.c.l.b16 %v680
        %v1817 = vunpack.c.l.b16 %v681
        %v1818 = vunpack.c.l.b16 %v682
        %v1819 = vunpack.c.l.b16 %v683
        %v1820 = vunpack.c.l.b16 %v684
        %v1821 = vunpack.c.l.b16 %v685
        %v1822 = vunpack.c.l.b16 %v686
        %v1823 = vunpack.c.l.b16 %v687
        %v1824 = vunpack.c.l.b16 %v688
        %v1825 = vunpack.c.l.b16 %v689
        %v1826 = vunpack.c.l.b16 %v690
        %v1827 = vunpack.c.l.b16 %v691
        %v1828 = vunpack.c.l.b16 %v692
        %v1829 = vunpack.c.l.b16 %v693
        %v1830 = vunpack.c.l.b16 %v694
        %v1831 = vunpack.c.l.b16 %v695
        %v1832 = vunpack.c.l.b16 %v696
        %v1833 = vunpack.c.l.b16 %v697
        %v1834 = vunpack.c.l.b16 %v698
        %v1835 = vunpack.c.l.b16 %v699
        %v1836 = vunpack.c.l.b16 %v700
        %v1837 = vunpack.c.l.b16 %v701
        %v1838 = vunpack.c.l.b16 %v702
        %v1839 = vunpack.c.l.b16 %v703
        %v1840 = vunpack.c.l.b16 %v704
        %v1841 = vunpack.c.l.b16 %v705
        %v1842 = vunpack.c.l.b16 %v706
        %v1843 = vunpack.c.l.b16 %v707
        %v1844 = vunpack.c.l.b16 %v708
        %v1845 = vunpack.c.l.b16 %v709
        %v1846 = vunpack.c.l.b16 %v710
        %v1847 = vunpack.c.l.b16 %v711
        %v1848 = vunpack.c.l.b16 %v712
        %v1849 = vunpack.c.l.b16 %v713
        %v1850 = vunpack.c.l.b16 %v714
        %v1851 = vunpack.c.l.b16 %v715
        %v1852 = vunpack.c.l.b16 %v716
        %v1853 = vunpack.c.l.b16 %v717
        %v1854 = vunpack.c.l.b16 %v718
        %v1855 = vunpack.c.l.b16 %v719
        %v1856 = vunpack.c.l.b16 %v720
        %v1857 = vunpack.c.l.b16 %v721
        %v1858 = vunpack.c.l.b16 %v722
        %v1859 = vunpack.c.l.b16 %v723
        %v1860 = vunpack.c.l.b16 %v724
        %v1861 = vunpack.c.l.b16 %v725
        %v1862 = vunpack.c.l.b16 %v726
        %v1863 = vunpack.c.l.b16 %v727
        %v1864 = vunpack.c.l.b16 %v728
        %v1865 = vunpack.c.l.b16 %v729
        %v1866 = vunpack.c.l.b16 %v730
        %v1867 = vunpack.c.l.b16 %v731
        %v1868 = vunpack.c.l.b16 %v732
        %v1869 = vunpack.c.l.b16 %v733
        %v1870 = vunpack.c.l.b16 %v734
        %v1871 = vunpack.c.l.b16 %v735
        %v1872 = vunpack.c.l.b16 %v736
        %v1873 = vunpack.c.l.b16 %v737
        %v1874 = vunpack.c.l.b16 %v738
        %v1875 = vunpack.c.l.b16 %v739
        %v1876 = vunpack.c.l.b16 %v740
        %v1877 = vunpack.c.l.b16 %v741
        %v1878 = vunpack.c.l.b16 %v742
        %v1879 = vunpack.c.l.b16 %v743
        %v1880 = vunpack.c.l.b16 %v744
        %v1881 = vunpack.c.l.b16 %v745
        %v1882 = vunpack.c.l.b16 %v746
        %v1883 = vunpack.c.l.b16 %v747
        %v1884 = vunpack.c.l.b16 %v748
        %v1885 = vunpack.c.l.b16 %v749
        %v1886 = vunpack.c.l.b16 %v750
        %v1887 = vunpack.c.l.b16 %v751
        %v1888 = vunpack.c.l.b16 %v752
        %v1889 = vunpack.c.l.b16 %v753
        %v1890 = vunpack.c.l.b16 %v754
        %v1891 = vunpack.c.l.b16 %v755
        %v1892 = vunpack.c.l.b16 %v756
        %v1893 = vunpack.c.l.b16 %v757
        %v1894 = vunpack.c.l.b16 %v758
        %v1895 = vunpack.c.l.b16 %v759
        %v1896 = vunpack.c.l.b16 %v760
        %v1897 = vunpack.c.l.b16 %v761
        %v1898 = vunpack.c.l.b16 %v762
        %v1899 = vunpack.c.l.b16 %v763
        %v1900 = vunpack.c.l.b16 %v764
        %v1901 = vunpack.c.l.b16 %v765
        %v1902 = vunpack.c.l.b16 %v766
        %v1903 = vunpack.c.l.b16 %v767
        %v1904 = vunpack.c.l.b16 %v768
        %v1905 = vunpack.c.l.b16 %v769
        %v1906 = vunpack.c.l.b16 %v770
        %v1907 = vunpack.c.l.b16 %v771
        %v1908 = vunpack.c.l.b16 %v772
        %v1909 = vunpack.c.l.b16 %v773
        %v1910 = vunpack.c.l.b16 %v774
        %v1911 = vunpack.c.l.b16 %v775
        %v1912 = vunpack.c.l.b16 %v776
        %v1913 = vunpack.c.l.b16 %v777
        %v1914 = vunpack.c.l.b16 %v778
        %v1915 = vunpack.c.l.b16 %v779
        %v1916 = vunpack.c.l.b16 %v780
        %v1917 = vunpack.c.l.b16 %v781
        %v1918 = vunpack.c.l.b16 %v782
        %v1919 = vunpack.c.l.b16 %v783
        %v1920 = vunpack.c.l.b16 %v784
        %v1921 = vunpack.c.l.b16 %v785
        %v1922 = vunpack.c.l.b16 %v786
        %v1923 = vunpack.c.l.b16 %v787
        %v1924 = vunpack.c.l.b16 %v788
        %v1925 = vunpack.c.l.b16 %v789
        %v1926 = vunpack.c.l.b16 %v790
        %v1927 = vunpack.c.l.b16 %v791
        %v1928 = vunpack.c.l.b16 %v792
        %v1929 = vunpack.c.l.b16 %v793
        %v1930 = vunpack.c.l.b16 %v794
        %v1931 = vunpack.c.l.b16 %v795
        %v1932 = vunpack.c.l.b16 %v796
        %v1933 = vunpack.c.l.b16 %v797
        %v1934 = vunpack.c.l.b16 %v798
        %v1935 = vunpack.c.l.b16 %v799
        %v1936 = vunpack.c.l.b16 %v800
        %v1937 = vunpack.c.l.b16 %v801
        %v1938 = vunpack.c.l.b16 %v802
        %v1939 = vunpack.c.l.b16 %v803
        %v1940 = vunpack.c.l.b16 %v804
        %v1941 = vunpack.c.l.b16 %v805
        %v1942 = vunpack.c.l.b16 %v806
        %v1943 = vunpack.c.l.b16 %v807
        %v1944 = vunpack.c.l.b16 %v808
        %v1945 = vunpack.c.l.b16 %v809
        %v1946 = vunpack.c.l.b16 %v810
        %v1947 = vunpack.c.l.b16 %v811
        %v1948 = vunpack.c.l.b16 %v812
        %v1949 = vunpack.c.l.b16 %v813
        %v1950 = vunpack.c.l.b16 %v814
        %v1951 = vunpack.c.l.b16 %v815
        %v1952 = vunpack.c.l.b16 %v816
        %v1953 = vunpack.c.l.b16 %v817
        %v1954 = vunpack.c.l.b16 %v818
        %v1955 = vunpack.c.l.b16 %v819
        %v1956 = vunpack.c.l.b16 %v820
        %v1957 = vunpack.c.l.b16 %v821
        %v1958 = vunpack.c.l.b16 %v822
        %v1959 = vunpack.c.l.b16 %v823
        %v1960 = vunpack.c.l.b16 %v824
        %v1961 = vunpack.c.l.b16 %v825
        %v1962 = vunpack.c.l.b16 %v826
        %v1963 = vunpack.c.l.b16 %v827
        %v1964 = vunpack.c.l.b16 %v828
        %v1965 = vunpack.c.l.b16 %v829
        %v1966 = vunpack.c.l.b16 %v830
        %v1967 = vunpack.c.l.b16 %v831
        %v1968 = vunpack.c.l.b16 %v832
        %v1969 = vunpack.c.l.b16 %v833
        %v1970 = vunpack.c.l.b16 %v834
        %v1971 = vunpack.c.l.b16 %v835
        %v1972 = vunpack.c.l.b16 %v836
        %v1973 = vunpack.c.l.b16 %v837
        %v1974 = vunpack.c.l.b16 %v838
        %v1975 = vunpack.c.l.b16 %v839
        %v1976 = vunpack.c.l.b16 %v840
        %v1977 = vunpack.c.l.b16 %v841
        %v1978 = vunpack.c.l.b16 %v842
        %v1979 = vunpack.c.l.b16 %v843
        %v1980 = vunpack.c.l.b16 %v844
        %v1981 = vunpack.c.l.b16 %v845
        %v1982 = vunpack.c.l.b16 %v846
        %v1983 = vunpack.c.l.b16 %v847
        %v1984 = vunpack.c.l.b16 %v848
        %v1985 = vunpack.c.l.b16 %v849
        %v1986 = vunpack.c.l.b16 %v850
        %v1987 = vunpack.c.l.b16 %v851
        %v1988 = vunpack.c.l.b16 %v852
        %v1989 = vunpack.c.l.b16 %v853
        %v1990 = vunpack.c.l.b16 %v854
        %v1991 = vunpack.c.l.b16 %v855
        %v1992 = vunpack.c.l.b16 %v856
        %v1993 = vunpack.c.l.b16 %v857
        %v1994 = vunpack.c.l.b16 %v858
        %v1995 = vunpack.c.l.b16 %v859
        %v1996 = vunpack.c.l.b16 %v860
        %v1997 = vunpack.c.l.b16 %v861
        %v1998 = vunpack.c.l.b16 %v862
        %v1999 = vunpack.c.l.b16 %v863
        %v2000 = vunpack.c.l.b16 %v864
        %v2001 = vunpack.c.l.b16 %v865
        %v2002 = vunpack.c.l.b16 %v866
        %v2003 = vunpack.c.l.b16 %v867
        %v2004 = vunpack.c.l.b16 %v868
        %v2005 = vunpack.c.l.b16 %v869
        %v2006 = vunpack.c.l.b16 %v870
        %v2007 = vunpack.c.l.b16 %v871
        %v2008 = vunpack.c.l.b16 %v872
        %v2009 = vunpack.c.l.b16 %v873
        %v2010 = vunpack.c.l.b16 %v874
        %v2011 = vunpack.c.l.b16 %v875
        %v2012 = vunpack.c.l.b16 %v876
        %v2013 = vunpack.c.l.b16 %v877
        %v2014 = vunpack.c.l.b16 %v878
        %v2015 = vunpack.c.l.b16 %v879
        %v2016 = vpack.c.b16 %v1505, %v1504
        %v2017 = vpack.c.b16 %v1507, %v1506
        %v2018 = vpack.c.b16 %v1509, %v1508
        %v2019 = vpack.c.b16 %v1511, %v1510
        %v2020 = vpack.c.b16 %v1513, %v1512
        %v2021 = vpack.c.b16 %v1515, %v1514
        %v2022 = vpack.c.b16 %v1517, %v1516
        %v2023 = vpack.c.b16 %v1519, %v1518
        %v2024 = vpack.c.b16 %v1521, %v1520
        %v2025 = vpack.c.b16 %v1523, %v1522
        %v2026 = vpack.c.b16 %v1525, %v1524
        %v2027 = vpack.c.b16 %v1527, %v1526
        %v2028 = vpack.c.b16 %v1529, %v1528
        %v2029 = vpack.c.b16 %v1531, %v1530
        %v2030 = vpack.c.b16 %v1533, %v1532
        %v2031 = vpack.c.b16 %v1535, %v1534
        %v2032 = vpack.c.b16 %v1537, %v1536
        %v2033 = vpack.c.b16 %v1539, %v1538
        %v2034 = vpack.c.b16 %v1541, %v1540
        %v2035 = vpack.c.b16 %v1543, %v1542
        %v2036 = vpack.c.b16 %v1545, %v1544
        %v2037 = vpack.c.b16 %v1547, %v1546
        %v2038 = vpack.c.b16 %v1549, %v1548
        %v2039 = vpack.c.b16 %v1551, %v1550
        %v2040 = vpack.c.b16 %v1553, %v1552
        %v2041 = vpack.c.b16 %v1555, %v1554
        %v2042 = vpack.c.b16 %v1557, %v1556
        %v2043 = vpack.c.b16 %v1559, %v1558
        %v2044 = vpack.c.b16 %v1561, %v1560
        %v2045 = vpack.c.b16 %v1563, %v1562
        %v2046 = vpack.c.b16 %v1565, %v1564
        %v2047 = vpack.c.b16 %v1567, %v1566
        %v2048 = vpack.c.b16 %v1569, %v1568
        %v2049 = vpack.c.b16 %v1571, %v1570
        %v2050 = vpack.c.b16 %v1573, %v1572
        %v2051 = vpack.c.b16 %v1575, %v1574
        %v2052 = vpack.c.b16 %v1577, %v1576
        %v2053 = vpack.c.b16 %v1579, %v1578
        %v2054 = vpack.c.b16 %v1581, %v1580
        %v2055 = vpack.c.b16 %v1583, %v1582
        %v2056 = vpack.c.b16 %v1585, %v1584
        %v2057 = vpack.c.b16 %v1587, %v1586
        %v2058 = vpack.c.b16 %v1589, %v1588
        %v2059 = vpack.c.b16 %v1591, %v1590
        %v2060 = vpack.c.b16 %v1593, %v1592
        %v2061 = vpack.c.b16 %v1595, %v1594
        %v2062 = vpack.c.b16 %v1597, %v1596
        %v2063 = vpack.c.b16 %v1599, %v1598
        %v2064 = vpack.c.b16 %v1601, %v1600
        %v2065 = vpack.c.b16 %v1603, %v1602
        %v2066 = vpack.c.b16 %v1605, %v1604
        %v2067 = vpack.c.b16 %v1607, %v1606
        %v2068 = vpack.c.b16 %v1609, %v1608
        %v2069 = vpack.c.b16 %v1611, %v1610
        %v2070 = vpack.c.b16 %v1613, %v1612
        %v2071 = vpack.c.b16 %v1615, %v1614
        %v2072 = vpack.c.b16 %v1617, %v1616
        %v2073 = vpack.c.b16 %v1619, %v1618
        %v2074 = vpack.c.b16 %v1621, %v1620
        %v2075 = vpack.c.b16 %v1623, %v1622
        %v2076 = vpack.c.b16 %v1625, %v1624
        %v2077 = vpack.c.b16 %v1627, %v1626
        %v2078 = vpack.c.b16 %v1629, %v1628
        %v2079 = vpack.c.b16 %v1631, %v1630
        %v2080 = vpack.c.b16 %v1633, %v1632
        %v2081 = vpack.c.b16 %v1635, %v1634
        %v2082 = vpack.c.b16 %v1637, %v1636
        %v2083 = vpack.c.b16 %v1639, %v1638
        %v2084 = vpack.c.b16 %v1641, %v1640
        %v2085 = vpack.c.b16 %v1643, %v1642
        %v2086 = vpack.c.b16 %v1645, %v1644
        %v2087 = vpack.c.b16 %v1647, %v1646
        %v2088 = vpack.c.b16 %v1649, %v1648
        %v2089 = vpack.c.b16 %v1651, %v1650
        %v2090 = vpack.c.b16 %v1653, %v1652
        %v2091 = vpack.c.b16 %v1655, %v1654
        %v2092 = vpack.c.b16 %v1657, %v1656
        %v2093 = vpack.c.b16 %v1659, %v1658
        %v2094 = vpack.c.b16 %v1661, %v1660
        %v2095 = vpack.c.b16 %v1663, %v1662
        %v2096 = vpack.c.b16 %v1665, %v1664
        %v2097 = vpack.c.b16 %v1667, %v1666
        %v2098 = vpack.c.b16 %v1669, %v1668
        %v2099 = vpack.c.b16 %v1671, %v1670
        %v2100 = vpack.c.b16 %v1673, %v1672
        %v2101 = vpack.c.b16 %v1675, %v1674
        %v2102 = vpack.c.b16 %v1677, %v1676
        %v2103 = vpack.c.b16 %v1679, %v1678
        %v2104 = vpack.c.b16 %v1681, %v1680
        %v2105 = vpack.c.b16 %v1683, %v1682
        %v2106 = vpack.c.b16 %v1685, %v1684
        %v2107 = vpack.c.b16 %v1687, %v1686
        %v2108 = vpack.c.b16 %v1689, %v1688
        %v2109 = vpack.c.b16 %v1691, %v1690
        %v2110 = vpack.c.b16 %v1693, %v1692
        %v2111 = vpack.c.b16 %v1695, %v1694
        %v2112 = vpack.c.b16 %v1697, %v1696
        %v2113 = vpack.c.b16 %v1699, %v1698
        %v2114 = vpack.c.b16 %v1701, %v1700
        %v2115 = vpack.c.b16 %v1703, %v1702
        %v2116 = vpack.c.b16 %v1705, %v1704
        %v2117 = vpack.c.b16 %v1707, %v1706
        %v2118 = vpack.c.b16 %v1709, %v1708
        %v2119 = vpack.c.b16 %v1711, %v1710
        %v2120 = vpack.c.b16 %v1713, %v1712
        %v2121 = vpack.c.b16 %v1715, %v1714
        %v2122 = vpack.c.b16 %v1717, %v1716
        %v2123 = vpack.c.b16 %v1719, %v1718
        %v2124 = vpack.c.b16 %v1721, %v1720
        %v2125 = vpack.c.b16 %v1723, %v1722
        %v2126 = vpack.c.b16 %v1725, %v1724
        %v2127 = vpack.c.b16 %v1727, %v1726
        %v2128 = vpack.c.b16 %v1729, %v1728
        %v2129 = vpack.c.b16 %v1731, %v1730
        %v2130 = vpack.c.b16 %v1733, %v1732
        %v2131 = vpack.c.b16 %v1735, %v1734
        %v2132 = vpack.c.b16 %v1737, %v1736
        %v2133 = vpack.c.b16 %v1739, %v1738
        %v2134 = vpack.c.b16 %v1741, %v1740
        %v2135 = vpack.c.b16 %v1743, %v1742
        %v2136 = vpack.c.b16 %v1745, %v1744
        %v2137 = vpack.c.b16 %v1747, %v1746
        %v2138 = vpack.c.b16 %v1749, %v1748
        %v2139 = vpack.c.b16 %v1751, %v1750
        %v2140 = vpack.c.b16 %v1753, %v1752
        %v2141 = vpack.c.b16 %v1755, %v1754
        %v2142 = vpack.c.b16 %v1757, %v1756
        %v2143 = vpack.c.b16 %v1759, %v1758
        %v2144 = vpack.c.b16 %v1761, %v1760
        %v2145 = vpack.c.b16 %v1763, %v1762
        %v2146 = vpack.c.b16 %v1765, %v1764
        %v2147 = vpack.c.b16 %v1767, %v1766
        %v2148 = vpack.c.b16 %v1769, %v1768
        %v2149 = vpack.c.b16 %v1771, %v1770
        %v2150 = vpack.c.b16 %v1773, %v1772
        %v2151 = vpack.c.b16 %v1775, %v1774
        %v2152 = vpack.c.b16 %v1777, %v1776
        %v2153 = vpack.c.b16 %v1779, %v1778
        %v2154 = vpack.c.b16 %v1781, %v1780
        %v2155 = vpack.c.b16 %v1783, %v1782
        %v2156 = vpack.c.b16 %v1785, %v1784
        %v2157 = vpack.c.b16 %v1787, %v1786
        %v2158 = vpack.c.b16 %v1789, %v1788
        %v2159 = vpack.c.b16 %v1791, %v1790
        %v2160 = vpack.c.b16 %v1793, %v1792
        %v2161 = vpack.c.b16 %v1795, %v1794
        %v2162 = vpack.c.b16 %v1797, %v1796
        %v2163 = vpack.c.b16 %v1799, %v1798
        %v2164 = vpack.c.b16 %v1801, %v1800
        %v2165 = vpack.c.b16 %v1803, %v1802
        %v2166 = vpack.c.b16 %v1805, %v1804
        %v2167 = vpack.c.b16 %v1807, %v1806
        %v2168 = vpack.c.b16 %v1809, %v1808
        %v2169 = vpack.c.b16 %v1811, %v1810
        %v2170 = vpack.c.b16 %v1813, %v1812
        %v2171 = vpack.c.b16 %v1815, %v1814
        %v2172 = vpack.c.b16 %v1817, %v1816
        %v2173 = vpack.c.b16 %v1819, %v1818
        %v2174 = vpack.c.b16 %v1821, %v1820
        %v2175 = vpack.c.b16 %v1823, %v1822
        %v2176 = vpack.c.b16 %v1825, %v1824
        %v2177 = vpack.c.b16 %v1827, %v1826
        %v2178 = vpack.c.b16 %v1829, %v1828
        %v2179 = vpack.c.b16 %v1831, %v1830
        %v2180 = vpack.c.b16 %v1833, %v1832
        %v2181 = vpack.c.b16 %v1835, %v1834
        %v2182 = vpack.c.b16 %v1837, %v1836
        %v2183 = vpack.c.b16 %v1839, %v1838
        %v2184 = vpack.c.b16 %v1841, %v1840
        %v2185 = vpack.c.b16 %v1843, %v1842
        %v2186 = vpack.c.b16 %v1845, %v1844
        %v2187 = vpack.c.b16 %v1847, %v1846
        %v2188 = vpack.c.b16 %v1849, %v1848
        %v2189 = vpack.c.b16 %v1851, %v1850
        %v2190 = vpack.c.b16 %v1853, %v1852
        %v2191 = vpack.c.b16 %v1855, %v1854
        %v2192 = vpack.c.b16 %v1857, %v1856
        %v2193 = vpack.c.b16 %v1859, %v1858
        %v2194 = vpack.c.b16 %v1861, %v1860
        %v2195 = vpack.c.b16 %v1863, %v1862
        %v2196 = vpack.c.b16 %v1865, %v1864
        %v2197 = vpack.c.b16 %v1867, %v1866
        %v2198 = vpack.c.b16 %v1869, %v1868
        %v2199 = vpack.c.b16 %v1871, %v1870
        %v2200 = vpack.c.b16 %v1873, %v1872
        %v2201 = vpack.c.b16 %v1875, %v1874
        %v2202 = vpack.c.b16 %v1877, %v1876
        %v2203 = vpack.c.b16 %v1879, %v1878
        %v2204 = vpack.c.b16 %v1881, %v1880
        %v2205 = vpack.c.b16 %v1883, %v1882
        %v2206 = vpack.c.b16 %v1885, %v1884
        %v2207 = vpack.c.b16 %v1887, %v1886
        %v2208 = vpack.c.b16 %v1889, %v1888
        %v2209 = vpack.c.b16 %v1891, %v1890
        %v2210 = vpack.c.b16 %v1893, %v1892
        %v2211 = vpack.c.b16 %v1895, %v1894
        %v2212 = vpack.c.b16 %v1897, %v1896
        %v2213 = vpack.c.b16 %v1899, %v1898
        %v2214 = vpack.c.b16 %v1901, %v1900
        %v2215 = vpack.c.b16 %v1903, %v1902
        %v2216 = vpack.c.b16 %v1905, %v1904
        %v2217 = vpack.c.b16 %v1907, %v1906
        %v2218 = vpack.c.b16 %v1909, %v1908
        %v2219 = vpack.c.b16 %v1911, %v1910
        %v2220 = vpack.c.b16 %v1913, %v1912
        %v2221 = vpack.c.b16 %v1915, %v1914
        %v2222 = vpack.c.b16 %v1917, %v1916
        %v2223 = vpack.c.b16 %v1919, %v1918
        %v2224 = vpack.c.b16 %v1921, %v1920
        %v2225 = vpack.c.b16 %v1923, %v1922
        %v2226 = vpack.c.b16 %v1925, %v1924
        %v2227 = vpack.c.b16 %v1927, %v1926
        %v2228 = vpack.c.b16 %v1929, %v1928
        %v2229 = vpack.c.b16 %v1931, %v1930
        %v2230 = vpack.c.b16 %v1933, %v1932
        %v2231 = vpack.c.b16 %v1935, %v1934
        %v2232 = vpack.c.b16 %v1937, %v1936
        %v2233 = vpack.c.b16 %v1939, %v1938
        %v2234 = vpack.c.b16 %v1941, %v1940
        %v2235 = vpack.c.b16 %v1943, %v1942
        %v2236 = vpack.c.b16 %v1945, %v1944
        %v2237 = vpack.c.b16 %v1947, %v1946
        %v2238 = vpack.c.b16 %v1949, %v1948
        %v2239 = vpack.c.b16 %v1951, %v1950
        %v2240 = vpack.c.b16 %v1953, %v1952
        %v2241 = vpack.c.b16 %v1955, %v1954
        %v2242 = vpack.c.b16 %v1957, %v1956
        %v2243 = vpack.c.b16 %v1959, %v1958
        %v2244 = vpack.c.b16 %v1961, %v1960
        %v2245 = vpack.c.b16 %v1963, %v1962
        %v2246 = vpack.c.b16 %v1965, %v1964
        %v2247 = vpack.c.b16 %v1967, %v1966
        %v2248 = vpack.c.b16 %v1969, %v1968
        %v2249 = vpack.c.b16 %v1971, %v1970
        %v2250 = vpack.c.b16 %v1973, %v1972
        %v2251 = vpack.c.b16 %v1975, %v1974
        %v2252 = vpack.c.b16 %v1977, %v1976
        %v2253 = vpack.c.b16 %v1979, %v1978
        %v2254 = vpack.c.b16 %v1981, %v1980
        %v2255 = vpack.c.b16 %v1983, %v1982
        %v2256 = vpack.c.b16 %v1985, %v1984
        %v2257 = vpack.c.b16 %v1987, %v1986
        %v2258 = vpack.c.b16 %v1989, %v1988
        %v2259 = vpack.c.b16 %v1991, %v1990
        %v2260 = vpack.c.b16 %v1993, %v1992
        %v2261 = vpack.c.b16 %v1995, %v1994
        %v2262 = vpack.c.b16 %v1997, %v1996
        %v2263 = vpack.c.b16 %v1999, %v1998
        %v2264 = vpack.c.b16 %v2001, %v2000
        %v2265 = vpack.c.b16 %v2003, %v2002
        %v2266 = vpack.c.b16 %v2005, %v2004
        %v2267 = vpack.c.b16 %v2007, %v2006
        %v2268 = vpack.c.b16 %v2009, %v2008
        %v2269 = vpack.c.b16 %v2011, %v2010
        %v2270 = vpack.c.b16 %v2013, %v2012
        %v2271 = vpack.c.b16 %v2015, %v2014
        %2528 = vmatprep.subr.bf16.mxu0 0
        %2529 = vmatpush1.bf16.msra.mxu0 %v2016
        %2530 = vmatprep.subr.bf16.mxu0 0
        %2531 = vmatpush1.bf16.msra.mxu0 %v2017
        %2532 = vmatprep.subr.bf16.mxu0 0
        %2533 = vmatpush1.bf16.msra.mxu0 %v2018
        %2534 = vmatprep.subr.bf16.mxu0 0
        %2535 = vmatpush1.bf16.msra.mxu0 %v2019
        %2536 = vmatprep.subr.bf16.mxu0 0
        %2537 = vmatpush1.bf16.msra.mxu0 %v2020
        %2538 = vmatprep.subr.bf16.mxu0 0
        %2539 = vmatpush1.bf16.msra.mxu0 %v2021
        %2540 = vmatprep.subr.bf16.mxu0 0
        %2541 = vmatpush1.bf16.msra.mxu0 %v2022
        %2542 = vmatprep.subr.bf16.mxu0 0
        %2543 = vmatpush1.bf16.msra.mxu0 %v2023
        %2544 = vmatprep.subr.bf16.mxu0 0
        %2545 = vmatpush1.bf16.msra.mxu0 %v2024
        %2546 = vmatprep.subr.bf16.mxu0 0
        %2547 = vmatpush1.bf16.msra.mxu0 %v2025
        %2548 = vmatprep.subr.bf16.mxu0 0
        %2549 = vmatpush1.bf16.msra.mxu0 %v2026
        %2550 = vmatprep.subr.bf16.mxu0 0
        %2551 = vmatpush1.bf16.msra.mxu0 %v2027
        %2552 = vmatprep.subr.bf16.mxu0 0
        %2553 = vmatpush1.bf16.msra.mxu0 %v2028
        %2554 = vmatprep.subr.bf16.mxu0 0
        %2555 = vmatpush1.bf16.msra.mxu0 %v2029
        %2556 = vmatprep.subr.bf16.mxu0 0
        %2557 = vmatpush1.bf16.msra.mxu0 %v2030
        %2558 = vmatprep.subr.bf16.mxu0 0
        %2559 = vmatpush1.bf16.msra.mxu0 %v2031
        %2560 = vmatprep.mubr.bf16.mxu0 %v929
        %2561 = vmatmul.mubr.bf16.gmra.mrb[0].mxu0 %v928
        %v2562 = vpop.f32.mrb[0].mxu0
        %v2563 = vadd.f32 0.0, %v2562
        %v2564 = vpop.f32.mrb[0].mxu0
        %v2565 = vpop.f32.mrb[0].mxu0
        %v2566 = vpop.f32.mrb[0].mxu0
        %2567 = vdwg.mxu0
        %2568 = vmatprep.subr.bf16.mxu0 0
        %2569 = vmatpush1.bf16.msra.mxu0 %v2032
        %2570 = vmatprep.subr.bf16.mxu0 0
        %2571 = vmatpush1.bf16.msra.mxu0 %v2033
        %2572 = vmatprep.subr.bf16.mxu0 0
        %2573 = vmatpush1.bf16.msra.mxu0 %v2034
        %2574 = vmatprep.subr.bf16.mxu0 0
        %2575 = vmatpush1.bf16.msra.mxu0 %v2035
        %2576 = vmatprep.subr.bf16.mxu0 0
        %2577 = vmatpush1.bf16.msra.mxu0 %v2036
        %2578 = vmatprep.subr.bf16.mxu0 0
        %2579 = vmatpush1.bf16.msra.mxu0 %v2037
        %2580 = vmatprep.subr.bf16.mxu0 0
        %2581 = vmatpush1.bf16.msra.mxu0 %v2038
        %2582 = vmatprep.subr.bf16.mxu0 0
        %2583 = vmatpush1.bf16.msra.mxu0 %v2039
        %2584 = vmatprep.subr.bf16.mxu0 0
        %2585 = vmatpush1.bf16.msra.mxu0 %v2040
        %2586 = vmatprep.subr.bf16.mxu0 0
        %2587 = vmatpush1.bf16.msra.mxu0 %v2041
        %2588 = vmatprep.subr.bf16.mxu0 0
        %2589 = vmatpush1.bf16.msra.mxu0 %v2042
        %2590 = vmatprep.subr.bf16.mxu0 0
        %2591 = vmatpush1.bf16.msra.mxu0 %v2043
        %2592 = vmatprep.subr.bf16.mxu0 0
        %2593 = vmatpush1.bf16.msra.mxu0 %v2044
        %2594 = vmatprep.subr.bf16.mxu0 0
        %2595 = vmatpush1.bf16.msra.mxu0 %v2045
        %2596 = vmatprep.subr.bf16.mxu0 0
        %2597 = vmatpush1.bf16.msra.mxu0 %v2046
        %2598 = vmatprep.subr.bf16.mxu0 0
        %2599 = vmatpush1.bf16.msra.mxu0 %v2047
        %2600 = vmatprep.mubr.bf16.mxu0 %v931
        %2601 = vmatmul.mubr.bf16.gmra.mrb[0].mxu0 %v930
        %v2602 = vpop.f32.mrb[0].mxu0
        %v2603 = vadd.f32 %v2563, %v2602
        %v2604 = vpop.f32.mrb[0].mxu0
        %v2605 = vpop.f32.mrb[0].mxu0
        %v2606 = vpop.f32.mrb[0].mxu0
        %2607 = vdwg.mxu0
        %2608 = vmatprep.subr.bf16.mxu0 0
        %2609 = vmatpush1.bf16.msra.mxu0 %v2048
        %2610 = vmatprep.subr.bf16.mxu0 0
        %2611 = vmatpush1.bf16.msra.mxu0 %v2049
        %2612 = vmatprep.subr.bf16.mxu0 0
        %2613 = vmatpush1.bf16.msra.mxu0 %v2050
        %2614 = vmatprep.subr.bf16.mxu0 0
        %2615 = vmatpush1.bf16.msra.mxu0 %v2051
        %2616 = vmatprep.subr.bf16.mxu0 0
        %2617 = vmatpush1.bf16.msra.mxu0 %v2052
        %2618 = vmatprep.subr.bf16.mxu0 0
        %2619 = vmatpush1.bf16.msra.mxu0 %v2053
        %2620 = vmatprep.subr.bf16.mxu0 0
        %2621 = vmatpush1.bf16.msra.mxu0 %v2054
        %2622 = vmatprep.subr.bf16.mxu0 0
        %2623 = vmatpush1.bf16.msra.mxu0 %v2055
        %2624 = vmatprep.subr.bf16.mxu0 0
        %2625 = vmatpush1.bf16.msra.mxu0 %v2056
        %2626 = vmatprep.subr.bf16.mxu0 0
        %2627 = vmatpush1.bf16.msra.mxu0 %v2057
        %2628 = vmatprep.subr.bf16.mxu0 0
        %2629 = vmatpush1.bf16.msra.mxu0 %v2058
        %2630 = vmatprep.subr.bf16.mxu0 0
        %2631 = vmatpush1.bf16.msra.mxu0 %v2059
        %2632 = vmatprep.subr.bf16.mxu0 0
        %2633 = vmatpush1.bf16.msra.mxu0 %v2060
        %2634 = vmatprep.subr.bf16.mxu0 0
        %2635 = vmatpush1.bf16.msra.mxu0 %v2061
        %2636 = vmatprep.subr.bf16.mxu0 0
        %2637 = vmatpush1.bf16.msra.mxu0 %v2062
        %2638 = vmatprep.subr.bf16.mxu0 0
        %2639 = vmatpush1.bf16.msra.mxu0 %v2063
        %2640 = vmatprep.mubr.bf16.mxu0 %v933
        %2641 = vmatmul.mubr.bf16.gmra.mrb[0].mxu0 %v932
        %v2642 = vpop.f32.mrb[0].mxu0
        %v2643 = vadd.f32 %v2603, %v2642
        %v2644 = vpop.f32.mrb[0].mxu0
        %v2645 = vpop.f32.mrb[0].mxu0
        %v2646 = vpop.f32.mrb[0].mxu0
        %2647 = vdwg.mxu0
        %2648 = vmatprep.subr.bf16.mxu0 0
        %2649 = vmatpush1.bf16.msra.mxu0 %v2064
        %2650 = vmatprep.subr.bf16.mxu0 0
        %2651 = vmatpush1.bf16.msra.mxu0 %v2065
        %2652 = vmatprep.subr.bf16.mxu0 0
        %2653 = vmatpush1.bf16.msra.mxu0 %v2066
        %2654 = vmatprep.subr.bf16.mxu0 0
        %2655 = vmatpush1.bf16.msra.mxu0 %v2067
        %2656 = vmatprep.subr.bf16.mxu0 0
        %2657 = vmatpush1.bf16.msra.mxu0 %v2068
        %2658 = vmatprep.subr.bf16.mxu0 0
        %2659 = vmatpush1.bf16.msra.mxu0 %v2069
        %2660 = vmatprep.subr.bf16.mxu0 0
        %2661 = vmatpush1.bf16.msra.mxu0 %v2070
        %2662 = vmatprep.subr.bf16.mxu0 0
        %2663 = vmatpush1.bf16.msra.mxu0 %v2071
        %2664 = vmatprep.subr.bf16.mxu0 0
        %2665 = vmatpush1.bf16.msra.mxu0 %v2072
        %2666 = vmatprep.subr.bf16.mxu0 0
        %2667 = vmatpush1.bf16.msra.mxu0 %v2073
        %2668 = vmatprep.subr.bf16.mxu0 0
        %2669 = vmatpush1.bf16.msra.mxu0 %v2074
        %2670 = vmatprep.subr.bf16.mxu0 0
        %2671 = vmatpush1.bf16.msra.mxu0 %v2075
        %2672 = vmatprep.subr.bf16.mxu0 0
        %2673 = vmatpush1.bf16.msra.mxu0 %v2076
        %2674 = vmatprep.subr.bf16.mxu0 0
        %2675 = vmatpush1.bf16.msra.mxu0 %v2077
        %2676 = vmatprep.subr.bf16.mxu0 0
        %2677 = vmatpush1.bf16.msra.mxu0 %v2078
        %2678 = vmatprep.subr.bf16.mxu0 0
        %2679 = vmatpush1.bf16.msra.mxu0 %v2079
        %2680 = vmatprep.mubr.bf16.mxu0 %v935
        %2681 = vmatmul.mubr.bf16.gmra.mrb[0].mxu0 %v934
        %v2682 = vpop.f32.mrb[0].mxu0
        %v2683 = vadd.f32 %v2643, %v2682
        %v2684 = vpop.f32.mrb[0].mxu0
        %v2685 = vpop.f32.mrb[0].mxu0
        %v2686 = vpop.f32.mrb[0].mxu0
        %2687 = vdwg.mxu0
        %2688 = vmatprep.subr.bf16.mxu0 0
        %2689 = vmatpush1.bf16.msra.mxu0 %v2080
        %2690 = vmatprep.subr.bf16.mxu0 0
        %2691 = vmatpush1.bf16.msra.mxu0 %v2081
        %2692 = vmatprep.subr.bf16.mxu0 0
        %2693 = vmatpush1.bf16.msra.mxu0 %v2082
        %2694 = vmatprep.subr.bf16.mxu0 0
        %2695 = vmatpush1.bf16.msra.mxu0 %v2083
        %2696 = vmatprep.subr.bf16.mxu0 0
        %2697 = vmatpush1.bf16.msra.mxu0 %v2084
        %2698 = vmatprep.subr.bf16.mxu0 0
        %2699 = vmatpush1.bf16.msra.mxu0 %v2085
        %2700 = vmatprep.subr.bf16.mxu0 0
        %2701 = vmatpush1.bf16.msra.mxu0 %v2086
        %2702 = vmatprep.subr.bf16.mxu0 0
        %2703 = vmatpush1.bf16.msra.mxu0 %v2087
        %2704 = vmatprep.subr.bf16.mxu0 0
        %2705 = vmatpush1.bf16.msra.mxu0 %v2088
        %2706 = vmatprep.subr.bf16.mxu0 0
        %2707 = vmatpush1.bf16.msra.mxu0 %v2089
        %2708 = vmatprep.subr.bf16.mxu0 0
        %2709 = vmatpush1.bf16.msra.mxu0 %v2090
        %2710 = vmatprep.subr.bf16.mxu0 0
        %2711 = vmatpush1.bf16.msra.mxu0 %v2091
        %2712 = vmatprep.subr.bf16.mxu0 0
        %2713 = vmatpush1.bf16.msra.mxu0 %v2092
        %2714 = vmatprep.subr.bf16.mxu0 0
        %2715 = vmatpush1.bf16.msra.mxu0 %v2093
        %2716 = vmatprep.subr.bf16.mxu0 0
        %2717 = vmatpush1.bf16.msra.mxu0 %v2094
        %2718 = vmatprep.subr.bf16.mxu0 0
        %2719 = vmatpush1.bf16.msra.mxu0 %v2095
        %2720 = vmatprep.mubr.bf16.mxu0 %v937
        %2721 = vmatmul.mubr.bf16.gmra.mrb[0].mxu0 %v936
        %v2722 = vpop.f32.mrb[0].mxu0
        %v2723 = vadd.f32 %v2683, %v2722
        %v2724 = vpop.f32.mrb[0].mxu0
        %v2725 = vpop.f32.mrb[0].mxu0
        %v2726 = vpop.f32.mrb[0].mxu0
        %2727 = vdwg.mxu0
        %2728 = vmatprep.subr.bf16.mxu0 0
        %2729 = vmatpush1.bf16.msra.mxu0 %v2096
        %2730 = vmatprep.subr.bf16.mxu0 0
        %2731 = vmatpush1.bf16.msra.mxu0 %v2097
        %2732 = vmatprep.subr.bf16.mxu0 0
        %2733 = vmatpush1.bf16.msra.mxu0 %v2098
        %2734 = vmatprep.subr.bf16.mxu0 0
        %2735 = vmatpush1.bf16.msra.mxu0 %v2099
        %2736 = vmatprep.subr.bf16.mxu0 0
        %2737 = vmatpush1.bf16.msra.mxu0 %v2100
        %2738 = vmatprep.subr.bf16.mxu0 0
        %2739 = vmatpush1.bf16.msra.mxu0 %v2101
        %2740 = vmatprep.subr.bf16.mxu0 0
        %2741 = vmatpush1.bf16.msra.mxu0 %v2102
        %2742 = vmatprep.subr.bf16.mxu0 0
        %2743 = vmatpush1.bf16.msra.mxu0 %v2103
        %2744 = vmatprep.subr.bf16.mxu0 0
        %2745 = vmatpush1.bf16.msra.mxu0 %v2104
        %2746 = vmatprep.subr.bf16.mxu0 0
        %2747 = vmatpush1.bf16.msra.mxu0 %v2105
        %2748 = vmatprep.subr.bf16.mxu0 0
        %2749 = vmatpush1.bf16.msra.mxu0 %v2106
        %2750 = vmatprep.subr.bf16.mxu0 0
        %2751 = vmatpush1.bf16.msra.mxu0 %v2107
        %2752 = vmatprep.subr.bf16.mxu0 0
        %2753 = vmatpush1.bf16.msra.mxu0 %v2108
        %2754 = vmatprep.subr.bf16.mxu0 0
        %2755 = vmatpush1.bf16.msra.mxu0 %v2109
        %2756 = vmatprep.subr.bf16.mxu0 0
        %2757 = vmatpush1.bf16.msra.mxu0 %v2110
        %2758 = vmatprep.subr.bf16.mxu0 0
        %2759 = vmatpush1.bf16.msra.mxu0 %v2111
        %2760 = vmatprep.mubr.bf16.mxu0 %v939
        %2761 = vmatmul.mubr.bf16.gmra.mrb[0].mxu0 %v938
        %v2762 = vpop.f32.mrb[0].mxu0
        %v2763 = vadd.f32 %v2723, %v2762
        %v2764 = vpop.f32.mrb[0].mxu0
        %v2765 = vpop.f32.mrb[0].mxu0
        %v2766 = vpop.f32.mrb[0].mxu0
        %2767 = vdwg.mxu0
        %2768 = vmatprep.subr.bf16.mxu0 0
        %2769 = vmatpush1.bf16.msra.mxu0 %v2112
        %2770 = vmatprep.subr.bf16.mxu0 0
        %2771 = vmatpush1.bf16.msra.mxu0 %v2113
        %2772 = vmatprep.subr.bf16.mxu0 0
        %2773 = vmatpush1.bf16.msra.mxu0 %v2114
        %2774 = vmatprep.subr.bf16.mxu0 0
        %2775 = vmatpush1.bf16.msra.mxu0 %v2115
        %2776 = vmatprep.subr.bf16.mxu0 0
        %2777 = vmatpush1.bf16.msra.mxu0 %v2116
        %2778 = vmatprep.subr.bf16.mxu0 0
        %2779 = vmatpush1.bf16.msra.mxu0 %v2117
        %2780 = vmatprep.subr.bf16.mxu0 0
        %2781 = vmatpush1.bf16.msra.mxu0 %v2118
        %2782 = vmatprep.subr.bf16.mxu0 0
        %2783 = vmatpush1.bf16.msra.mxu0 %v2119
        %2784 = vmatprep.subr.bf16.mxu0 0
        %2785 = vmatpush1.bf16.msra.mxu0 %v2120
        %2786 = vmatprep.subr.bf16.mxu0 0
        %2787 = vmatpush1.bf16.msra.mxu0 %v2121
        %2788 = vmatprep.subr.bf16.mxu0 0
        %2789 = vmatpush1.bf16.msra.mxu0 %v2122
        %2790 = vmatprep.subr.bf16.mxu0 0
        %2791 = vmatpush1.bf16.msra.mxu0 %v2123
        %2792 = vmatprep.subr.bf16.mxu0 0
        %2793 = vmatpush1.bf16.msra.mxu0 %v2124
        %2794 = vmatprep.subr.bf16.mxu0 0
        %2795 = vmatpush1.bf16.msra.mxu0 %v2125
        %2796 = vmatprep.subr.bf16.mxu0 0
        %2797 = vmatpush1.bf16.msra.mxu0 %v2126
        %2798 = vmatprep.subr.bf16.mxu0 0
        %2799 = vmatpush1.bf16.msra.mxu0 %v2127
        %2800 = vmatprep.mubr.bf16.mxu0 %v941
        %2801 = vmatmul.mubr.bf16.gmra.mrb[0].mxu0 %v940
        %v2802 = vpop.f32.mrb[0].mxu0
        %v2803 = vadd.f32 %v2763, %v2802
        %v2804 = vpop.f32.mrb[0].mxu0
        %v2805 = vpop.f32.mrb[0].mxu0
        %v2806 = vpop.f32.mrb[0].mxu0
        %2807 = vdwg.mxu0
        %2808 = vmatprep.subr.bf16.mxu0 0
        %2809 = vmatpush1.bf16.msra.mxu0 %v2128
        %2810 = vmatprep.subr.bf16.mxu0 0
        %2811 = vmatpush1.bf16.msra.mxu0 %v2129
        %2812 = vmatprep.subr.bf16.mxu0 0
        %2813 = vmatpush1.bf16.msra.mxu0 %v2130
        %2814 = vmatprep.subr.bf16.mxu0 0
        %2815 = vmatpush1.bf16.msra.mxu0 %v2131
        %2816 = vmatprep.subr.bf16.mxu0 0
        %2817 = vmatpush1.bf16.msra.mxu0 %v2132
        %2818 = vmatprep.subr.bf16.mxu0 0
        %2819 = vmatpush1.bf16.msra.mxu0 %v2133
        %2820 = vmatprep.subr.bf16.mxu0 0
        %2821 = vmatpush1.bf16.msra.mxu0 %v2134
        %2822 = vmatprep.subr.bf16.mxu0 0
        %2823 = vmatpush1.bf16.msra.mxu0 %v2135
        %2824 = vmatprep.subr.bf16.mxu0 0
        %2825 = vmatpush1.bf16.msra.mxu0 %v2136
        %2826 = vmatprep.subr.bf16.mxu0 0
        %2827 = vmatpush1.bf16.msra.mxu0 %v2137
        %2828 = vmatprep.subr.bf16.mxu0 0
        %2829 = vmatpush1.bf16.msra.mxu0 %v2138
        %2830 = vmatprep.subr.bf16.mxu0 0
        %2831 = vmatpush1.bf16.msra.mxu0 %v2139
        %2832 = vmatprep.subr.bf16.mxu0 0
        %2833 = vmatpush1.bf16.msra.mxu0 %v2140
        %2834 = vmatprep.subr.bf16.mxu0 0
        %2835 = vmatpush1.bf16.msra.mxu0 %v2141
        %2836 = vmatprep.subr.bf16.mxu0 0
        %2837 = vmatpush1.bf16.msra.mxu0 %v2142
        %2838 = vmatprep.subr.bf16.mxu0 0
        %2839 = vmatpush1.bf16.msra.mxu0 %v2143
        %2840 = vmatprep.mubr.bf16.mxu0 %v943
        %2841 = vmatmul.mubr.bf16.gmra.mrb[0].mxu0 %v942
        %v2842 = vpop.f32.mrb[0].mxu0
        %v2843 = vadd.f32 %v2803, %v2842
        %v2844 = vpop.f32.mrb[0].mxu0
        %v2845 = vpop.f32.mrb[0].mxu0
        %v2846 = vpop.f32.mrb[0].mxu0
        %2847 = vdwg.mxu0
        %2848 = vmatprep.subr.bf16.mxu0 0
        %2849 = vmatpush1.bf16.msra.mxu0 %v2144
        %2850 = vmatprep.subr.bf16.mxu0 0
        %2851 = vmatpush1.bf16.msra.mxu0 %v2145
        %2852 = vmatprep.subr.bf16.mxu0 0
        %2853 = vmatpush1.bf16.msra.mxu0 %v2146
        %2854 = vmatprep.subr.bf16.mxu0 0
        %2855 = vmatpush1.bf16.msra.mxu0 %v2147
        %2856 = vmatprep.subr.bf16.mxu0 0
        %2857 = vmatpush1.bf16.msra.mxu0 %v2148
        %2858 = vmatprep.subr.bf16.mxu0 0
        %2859 = vmatpush1.bf16.msra.mxu0 %v2149
        %2860 = vmatprep.subr.bf16.mxu0 0
        %2861 = vmatpush1.bf16.msra.mxu0 %v2150
        %2862 = vmatprep.subr.bf16.mxu0 0
        %2863 = vmatpush1.bf16.msra.mxu0 %v2151
        %2864 = vmatprep.subr.bf16.mxu0 0
        %2865 = vmatpush1.bf16.msra.mxu0 %v2152
        %2866 = vmatprep.subr.bf16.mxu0 0
        %2867 = vmatpush1.bf16.msra.mxu0 %v2153
        %2868 = vmatprep.subr.bf16.mxu0 0
        %2869 = vmatpush1.bf16.msra.mxu0 %v2154
        %2870 = vmatprep.subr.bf16.mxu0 0
        %2871 = vmatpush1.bf16.msra.mxu0 %v2155
        %2872 = vmatprep.subr.bf16.mxu0 0
        %2873 = vmatpush1.bf16.msra.mxu0 %v2156
        %2874 = vmatprep.subr.bf16.mxu0 0
        %2875 = vmatpush1.bf16.msra.mxu0 %v2157
        %2876 = vmatprep.subr.bf16.mxu0 0
        %2877 = vmatpush1.bf16.msra.mxu0 %v2158
        %2878 = vmatprep.subr.bf16.mxu0 0
        %2879 = vmatpush1.bf16.msra.mxu0 %v2159
        %2880 = vmatprep.mubr.bf16.mxu0 %v945
        %2881 = vmatmul.mubr.bf16.gmra.mrb[0].mxu0 %v944
        %v2882 = vpop.f32.mrb[0].mxu0
        %v2883 = vadd.f32 %v2843, %v2882
        %v2884 = vpop.f32.mrb[0].mxu0
        %v2885 = vpop.f32.mrb[0].mxu0
        %v2886 = vpop.f32.mrb[0].mxu0
        %2887 = vdwg.mxu0
        %2888 = vmatprep.subr.bf16.mxu0 0
        %2889 = vmatpush1.bf16.msra.mxu0 %v2160
        %2890 = vmatprep.subr.bf16.mxu0 0
        %2891 = vmatpush1.bf16.msra.mxu0 %v2161
        %2892 = vmatprep.subr.bf16.mxu0 0
        %2893 = vmatpush1.bf16.msra.mxu0 %v2162
        %2894 = vmatprep.subr.bf16.mxu0 0
        %2895 = vmatpush1.bf16.msra.mxu0 %v2163
        %2896 = vmatprep.subr.bf16.mxu0 0
        %2897 = vmatpush1.bf16.msra.mxu0 %v2164
        %2898 = vmatprep.subr.bf16.mxu0 0
        %2899 = vmatpush1.bf16.msra.mxu0 %v2165
        %2900 = vmatprep.subr.bf16.mxu0 0
        %2901 = vmatpush1.bf16.msra.mxu0 %v2166
        %2902 = vmatprep.subr.bf16.mxu0 0
        %2903 = vmatpush1.bf16.msra.mxu0 %v2167
        %2904 = vmatprep.subr.bf16.mxu0 0
        %2905 = vmatpush1.bf16.msra.mxu0 %v2168
        %2906 = vmatprep.subr.bf16.mxu0 0
        %2907 = vmatpush1.bf16.msra.mxu0 %v2169
        %2908 = vmatprep.subr.bf16.mxu0 0
        %2909 = vmatpush1.bf16.msra.mxu0 %v2170
        %2910 = vmatprep.subr.bf16.mxu0 0
        %2911 = vmatpush1.bf16.msra.mxu0 %v2171
        %2912 = vmatprep.subr.bf16.mxu0 0
        %2913 = vmatpush1.bf16.msra.mxu0 %v2172
        %2914 = vmatprep.subr.bf16.mxu0 0
        %2915 = vmatpush1.bf16.msra.mxu0 %v2173
        %2916 = vmatprep.subr.bf16.mxu0 0
        %2917 = vmatpush1.bf16.msra.mxu0 %v2174
        %2918 = vmatprep.subr.bf16.mxu0 0
        %2919 = vmatpush1.bf16.msra.mxu0 %v2175
        %2920 = vmatprep.mubr.bf16.mxu0 %v947
        %2921 = vmatmul.mubr.bf16.gmra.mrb[0].mxu0 %v946
        %v2922 = vpop.f32.mrb[0].mxu0
        %v2923 = vadd.f32 %v2883, %v2922
        %v2924 = vpop.f32.mrb[0].mxu0
        %v2925 = vpop.f32.mrb[0].mxu0
        %v2926 = vpop.f32.mrb[0].mxu0
        %2927 = vdwg.mxu0
        %2928 = vmatprep.subr.bf16.mxu0 0
        %2929 = vmatpush1.bf16.msra.mxu0 %v2176
        %2930 = vmatprep.subr.bf16.mxu0 0
        %2931 = vmatpush1.bf16.msra.mxu0 %v2177
        %2932 = vmatprep.subr.bf16.mxu0 0
        %2933 = vmatpush1.bf16.msra.mxu0 %v2178
        %2934 = vmatprep.subr.bf16.mxu0 0
        %2935 = vmatpush1.bf16.msra.mxu0 %v2179
        %2936 = vmatprep.subr.bf16.mxu0 0
        %2937 = vmatpush1.bf16.msra.mxu0 %v2180
        %2938 = vmatprep.subr.bf16.mxu0 0
        %2939 = vmatpush1.bf16.msra.mxu0 %v2181
        %2940 = vmatprep.subr.bf16.mxu0 0
        %2941 = vmatpush1.bf16.msra.mxu0 %v2182
        %2942 = vmatprep.subr.bf16.mxu0 0
        %2943 = vmatpush1.bf16.msra.mxu0 %v2183
        %2944 = vmatprep.subr.bf16.mxu0 0
        %2945 = vmatpush1.bf16.msra.mxu0 %v2184
        %2946 = vmatprep.subr.bf16.mxu0 0
        %2947 = vmatpush1.bf16.msra.mxu0 %v2185
        %2948 = vmatprep.subr.bf16.mxu0 0
        %2949 = vmatpush1.bf16.msra.mxu0 %v2186
        %2950 = vmatprep.subr.bf16.mxu0 0
        %2951 = vmatpush1.bf16.msra.mxu0 %v2187
        %2952 = vmatprep.subr.bf16.mxu0 0
        %2953 = vmatpush1.bf16.msra.mxu0 %v2188
        %2954 = vmatprep.subr.bf16.mxu0 0
        %2955 = vmatpush1.bf16.msra.mxu0 %v2189
        %2956 = vmatprep.subr.bf16.mxu0 0
        %2957 = vmatpush1.bf16.msra.mxu0 %v2190
        %2958 = vmatprep.subr.bf16.mxu0 0
        %2959 = vmatpush1.bf16.msra.mxu0 %v2191
        %2960 = vmatprep.mubr.bf16.mxu0 %v949
        %2961 = vmatmul.mubr.bf16.gmra.mrb[0].mxu0 %v948
        %v2962 = vpop.f32.mrb[0].mxu0
        %v2963 = vadd.f32 %v2923, %v2962
        %v2964 = vpop.f32.mrb[0].mxu0
        %v2965 = vpop.f32.mrb[0].mxu0
        %v2966 = vpop.f32.mrb[0].mxu0
        %2967 = vdwg.mxu0
        %2968 = vmatprep.subr.bf16.mxu0 0
        %2969 = vmatpush1.bf16.msra.mxu0 %v2192
        %2970 = vmatprep.subr.bf16.mxu0 0
        %2971 = vmatpush1.bf16.msra.mxu0 %v2193
        %2972 = vmatprep.subr.bf16.mxu0 0
        %2973 = vmatpush1.bf16.msra.mxu0 %v2194
        %2974 = vmatprep.subr.bf16.mxu0 0
        %2975 = vmatpush1.bf16.msra.mxu0 %v2195
        %2976 = vmatprep.subr.bf16.mxu0 0
        %2977 = vmatpush1.bf16.msra.mxu0 %v2196
        %2978 = vmatprep.subr.bf16.mxu0 0
        %2979 = vmatpush1.bf16.msra.mxu0 %v2197
        %2980 = vmatprep.subr.bf16.mxu0 0
        %2981 = vmatpush1.bf16.msra.mxu0 %v2198
        %2982 = vmatprep.subr.bf16.mxu0 0
        %2983 = vmatpush1.bf16.msra.mxu0 %v2199
        %2984 = vmatprep.subr.bf16.mxu0 0
        %2985 = vmatpush1.bf16.msra.mxu0 %v2200
        %2986 = vmatprep.subr.bf16.mxu0 0
        %2987 = vmatpush1.bf16.msra.mxu0 %v2201
        %2988 = vmatprep.subr.bf16.mxu0 0
        %2989 = vmatpush1.bf16.msra.mxu0 %v2202
        %2990 = vmatprep.subr.bf16.mxu0 0
        %2991 = vmatpush1.bf16.msra.mxu0 %v2203
        %2992 = vmatprep.subr.bf16.mxu0 0
        %2993 = vmatpush1.bf16.msra.mxu0 %v2204
        %2994 = vmatprep.subr.bf16.mxu0 0
        %2995 = vmatpush1.bf16.msra.mxu0 %v2205
        %2996 = vmatprep.subr.bf16.mxu0 0
        %2997 = vmatpush1.bf16.msra.mxu0 %v2206
        %2998 = vmatprep.subr.bf16.mxu0 0
        %2999 = vmatpush1.bf16.msra.mxu0 %v2207
        %3000 = vmatprep.mubr.bf16.mxu0 %v951
        %3001 = vmatmul.mubr.bf16.gmra.mrb[0].mxu0 %v950
        %v3002 = vpop.f32.mrb[0].mxu0
        %v3003 = vadd.f32 %v2963, %v3002
        %v3004 = vpop.f32.mrb[0].mxu0
        %v3005 = vpop.f32.mrb[0].mxu0
        %v3006 = vpop.f32.mrb[0].mxu0
        %3007 = vdwg.mxu0
        %3008 = vmatprep.subr.bf16.mxu0 0
        %3009 = vmatpush1.bf16.msra.mxu0 %v2208
        %3010 = vmatprep.subr.bf16.mxu0 0
        %3011 = vmatpush1.bf16.msra.mxu0 %v2209
        %3012 = vmatprep.subr.bf16.mxu0 0
        %3013 = vmatpush1.bf16.msra.mxu0 %v2210
        %3014 = vmatprep.subr.bf16.mxu0 0
        %3015 = vmatpush1.bf16.msra.mxu0 %v2211
        %3016 = vmatprep.subr.bf16.mxu0 0
        %3017 = vmatpush1.bf16.msra.mxu0 %v2212
        %3018 = vmatprep.subr.bf16.mxu0 0
        %3019 = vmatpush1.bf16.msra.mxu0 %v2213
        %3020 = vmatprep.subr.bf16.mxu0 0
        %3021 = vmatpush1.bf16.msra.mxu0 %v2214
        %3022 = vmatprep.subr.bf16.mxu0 0
        %3023 = vmatpush1.bf16.msra.mxu0 %v2215
        %3024 = vmatprep.subr.bf16.mxu0 0
        %3025 = vmatpush1.bf16.msra.mxu0 %v2216
        %3026 = vmatprep.subr.bf16.mxu0 0
        %3027 = vmatpush1.bf16.msra.mxu0 %v2217
        %3028 = vmatprep.subr.bf16.mxu0 0
        %3029 = vmatpush1.bf16.msra.mxu0 %v2218
        %3030 = vmatprep.subr.bf16.mxu0 0
        %3031 = vmatpush1.bf16.msra.mxu0 %v2219
        %3032 = vmatprep.subr.bf16.mxu0 0
        %3033 = vmatpush1.bf16.msra.mxu0 %v2220
        %3034 = vmatprep.subr.bf16.mxu0 0
        %3035 = vmatpush1.bf16.msra.mxu0 %v2221
        %3036 = vmatprep.subr.bf16.mxu0 0
        %3037 = vmatpush1.bf16.msra.mxu0 %v2222
        %3038 = vmatprep.subr.bf16.mxu0 0
        %3039 = vmatpush1.bf16.msra.mxu0 %v2223
        %3040 = vmatprep.mubr.bf16.mxu0 %v953
        %3041 = vmatmul.mubr.bf16.gmra.mrb[0].mxu0 %v952
        %v3042 = vpop.f32.mrb[0].mxu0
        %v3043 = vadd.f32 %v3003, %v3042
        %v3044 = vpop.f32.mrb[0].mxu0
        %v3045 = vpop.f32.mrb[0].mxu0
        %v3046 = vpop.f32.mrb[0].mxu0
        %3047 = vdwg.mxu0
        %3048 = vmatprep.subr.bf16.mxu0 0
        %3049 = vmatpush1.bf16.msra.mxu0 %v2224
        %3050 = vmatprep.subr.bf16.mxu0 0
        %3051 = vmatpush1.bf16.msra.mxu0 %v2225
        %3052 = vmatprep.subr.bf16.mxu0 0
        %3053 = vmatpush1.bf16.msra.mxu0 %v2226
        %3054 = vmatprep.subr.bf16.mxu0 0
        %3055 = vmatpush1.bf16.msra.mxu0 %v2227
        %3056 = vmatprep.subr.bf16.mxu0 0
        %3057 = vmatpush1.bf16.msra.mxu0 %v2228
        %3058 = vmatprep.subr.bf16.mxu0 0
        %3059 = vmatpush1.bf16.msra.mxu0 %v2229
        %3060 = vmatprep.subr.bf16.mxu0 0
        %3061 = vmatpush1.bf16.msra.mxu0 %v2230
        %3062 = vmatprep.subr.bf16.mxu0 0
        %3063 = vmatpush1.bf16.msra.mxu0 %v2231
        %3064 = vmatprep.subr.bf16.mxu0 0
        %3065 = vmatpush1.bf16.msra.mxu0 %v2232
        %3066 = vmatprep.subr.bf16.mxu0 0
        %3067 = vmatpush1.bf16.msra.mxu0 %v2233
        %3068 = vmatprep.subr.bf16.mxu0 0
        %3069 = vmatpush1.bf16.msra.mxu0 %v2234
        %3070 = vmatprep.subr.bf16.mxu0 0
        %3071 = vmatpush1.bf16.msra.mxu0 %v2235
        %3072 = vmatprep.subr.bf16.mxu0 0
        %3073 = vmatpush1.bf16.msra.mxu0 %v2236
        %3074 = vmatprep.subr.bf16.mxu0 0
        %3075 = vmatpush1.bf16.msra.mxu0 %v2237
        %3076 = vmatprep.subr.bf16.mxu0 0
        %3077 = vmatpush1.bf16.msra.mxu0 %v2238
        %3078 = vmatprep.subr.bf16.mxu0 0
        %3079 = vmatpush1.bf16.msra.mxu0 %v2239
        %3080 = vmatprep.mubr.bf16.mxu0 %v955
        %3081 = vmatmul.mubr.bf16.gmra.mrb[0].mxu0 %v954
        %v3082 = vpop.f32.mrb[0].mxu0
        %v3083 = vadd.f32 %v3043, %v3082
        %v3084 = vpop.f32.mrb[0].mxu0
        %v3085 = vpop.f32.mrb[0].mxu0
        %v3086 = vpop.f32.mrb[0].mxu0
        %3087 = vdwg.mxu0
        %3088 = vmatprep.subr.bf16.mxu0 0
        %3089 = vmatpush1.bf16.msra.mxu0 %v2240
        %3090 = vmatprep.subr.bf16.mxu0 0
        %3091 = vmatpush1.bf16.msra.mxu0 %v2241
        %3092 = vmatprep.subr.bf16.mxu0 0
        %3093 = vmatpush1.bf16.msra.mxu0 %v2242
        %3094 = vmatprep.subr.bf16.mxu0 0
        %3095 = vmatpush1.bf16.msra.mxu0 %v2243
        %3096 = vmatprep.subr.bf16.mxu0 0
        %3097 = vmatpush1.bf16.msra.mxu0 %v2244
        %3098 = vmatprep.subr.bf16.mxu0 0
        %3099 = vmatpush1.bf16.msra.mxu0 %v2245
        %3100 = vmatprep.subr.bf16.mxu0 0
        %3101 = vmatpush1.bf16.msra.mxu0 %v2246
        %3102 = vmatprep.subr.bf16.mxu0 0
        %3103 = vmatpush1.bf16.msra.mxu0 %v2247
        %3104 = vmatprep.subr.bf16.mxu0 0
        %3105 = vmatpush1.bf16.msra.mxu0 %v2248
        %3106 = vmatprep.subr.bf16.mxu0 0
        %3107 = vmatpush1.bf16.msra.mxu0 %v2249
        %3108 = vmatprep.subr.bf16.mxu0 0
        %3109 = vmatpush1.bf16.msra.mxu0 %v2250
        %3110 = vmatprep.subr.bf16.mxu0 0
        %3111 = vmatpush1.bf16.msra.mxu0 %v2251
        %3112 = vmatprep.subr.bf16.mxu0 0
        %3113 = vmatpush1.bf16.msra.mxu0 %v2252
        %3114 = vmatprep.subr.bf16.mxu0 0
        %3115 = vmatpush1.bf16.msra.mxu0 %v2253
        %3116 = vmatprep.subr.bf16.mxu0 0
        %3117 = vmatpush1.bf16.msra.mxu0 %v2254
        %3118 = vmatprep.subr.bf16.mxu0 0
        %3119 = vmatpush1.bf16.msra.mxu0 %v2255
        %3120 = vmatprep.mubr.bf16.mxu0 %v957
        %3121 = vmatmul.mubr.bf16.gmra.mrb[0].mxu0 %v956
        %v3122 = vpop.f32.mrb[0].mxu0
        %v3123 = vadd.f32 %v3083, %v3122
        %v3124 = vpop.f32.mrb[0].mxu0
        %v3125 = vpop.f32.mrb[0].mxu0
        %v3126 = vpop.f32.mrb[0].mxu0
        %3127 = vdwg.mxu0
        %3128 = vmatprep.subr.bf16.mxu0 0
        %3129 = vmatpush1.bf16.msra.mxu0 %v2256
        %3130 = vmatprep.subr.bf16.mxu0 0
        %3131 = vmatpush1.bf16.msra.mxu0 %v2257
        %3132 = vmatprep.subr.bf16.mxu0 0
        %3133 = vmatpush1.bf16.msra.mxu0 %v2258
        %3134 = vmatprep.subr.bf16.mxu0 0
        %3135 = vmatpush1.bf16.msra.mxu0 %v2259
        %3136 = vmatprep.subr.bf16.mxu0 0
        %3137 = vmatpush1.bf16.msra.mxu0 %v2260
        %3138 = vmatprep.subr.bf16.mxu0 0
        %3139 = vmatpush1.bf16.msra.mxu0 %v2261
        %3140 = vmatprep.subr.bf16.mxu0 0
        %3141 = vmatpush1.bf16.msra.mxu0 %v2262
        %3142 = vmatprep.subr.bf16.mxu0 0
        %3143 = vmatpush1.bf16.msra.mxu0 %v2263
        %3144 = vmatprep.subr.bf16.mxu0 0
        %3145 = vmatpush1.bf16.msra.mxu0 %v2264
        %3146 = vmatprep.subr.bf16.mxu0 0
        %3147 = vmatpush1.bf16.msra.mxu0 %v2265
        %3148 = vmatprep.subr.bf16.mxu0 0
        %3149 = vmatpush1.bf16.msra.mxu0 %v2266
        %3150 = vmatprep.subr.bf16.mxu0 0
        %3151 = vmatpush1.bf16.msra.mxu0 %v2267
        %3152 = vmatprep.subr.bf16.mxu0 0
        %3153 = vmatpush1.bf16.msra.mxu0 %v2268
        %3154 = vmatprep.subr.bf16.mxu0 0
        %3155 = vmatpush1.bf16.msra.mxu0 %v2269
        %3156 = vmatprep.subr.bf16.mxu0 0
        %3157 = vmatpush1.bf16.msra.mxu0 %v2270
        %3158 = vmatprep.subr.bf16.mxu0 0
        %3159 = vmatpush1.bf16.msra.mxu0 %v2271
        %3160 = vmatprep.mubr.bf16.mxu0 %v959
        %3161 = vmatmul.mubr.bf16.gmra.mrb[0].mxu0 %v958
        %v3162 = vpop.f32.mrb[0].mxu0
        %v3163 = vadd.f32 %v3123, %v3162
        %v3164 = vpop.f32.mrb[0].mxu0
        %v3165 = vpop.f32.mrb[0].mxu0
        %v3166 = vpop.f32.mrb[0].mxu0
        %3167 = vdwg.mxu0
        %v3168 = vadd.f32 %v351, %v3163
        %3169 = vst [vmem:[#allocation2] sm:$0xff] %v3168
        %p3170 = scmp.eq.s32.totalorder %s23, 3
        // Predicated region
        $region69: #{model_forward.1} parent=47 // pred_check
          %p3171 = pneg %p3170
        $region70: #{model_forward.1} parent=47 // pred_check_branch
          %3173 = sbr.rel (%p3171) target = $region72
        $region71: #{model_forward.1} parent=47 // pred_region
          %v3174 = vld [vmem:[#allocation2] sm:$0xff]
          %v3175 = vld [vmem:[#allocation5] sm:$0x1]
          %v3177 = vlaneseq
          %v3178 = vshrl.u32 %v3177, 7
          %v3179 = vsub.s32 0, %v3178
          %v3180 = vrot.slane %v3175, %v3179
          %v3182 = vadd.f32 %v3174, %v3180
          %v3183 = vmax.f32 %v3182, 0.0
          %v3184 = vld [vmem:[%s3] sm:$0xff]
          %v3185 = vld [vmem:[%s3 + $0x8] sm:$0xff]
          %v3186 = vld [vmem:[%s3 + $0x10] sm:$0xff]
          %v3187 = vld [vmem:[%s3 + $0x18] sm:$0xff]
          %v3188 = vld [vmem:[%s3 + $0x20] sm:$0xff]
          %v3189 = vld [vmem:[%s3 + $0x28] sm:$0xff]
          %v3190 = vld [vmem:[%s3 + $0x30] sm:$0xff]
          %v3191 = vld [vmem:[%s3 + $0x38] sm:$0xff]
          %v3192 = vld [vmem:[%s3 + $0x40] sm:$0xff]
          %v3193 = vld [vmem:[%s3 + $0x48] sm:$0xff]
          %v3194 = vld [vmem:[%s3 + $0x50] sm:$0xff]
          %v3195 = vld [vmem:[%s3 + $0x58] sm:$0xff]
          %v3196 = vld [vmem:[%s3 + $0x60] sm:$0xff]
          %v3197 = vld [vmem:[%s3 + $0x68] sm:$0xff]
          %v3198 = vld [vmem:[%s3 + $0x70] sm:$0xff]
          %v3199 = vld [vmem:[%s3 + $0x78] sm:$0xff]
          %v3200 = vld [vmem:[#allocation7] sm:$0x1]
          %v3202 = vlaneseq
          %v3203 = vshrl.u32 %v3202, 7
          %v3204 = vsub.s32 0, %v3203
          %v3205 = vrot.slane %v3200, %v3204
          %3207 = vmatprep.subr.mxu0 0.0
          %3208 = vmatpush1.msra.mxu0 %v3184
          %3209 = vmatprep.subr.mxu0 0.0
          %3210 = vmatpush1.msra.mxu0 %v3185
          %3211 = vmatprep.subr.mxu0 0.0
          %3212 = vmatpush1.msra.mxu0 %v3186
          %3213 = vmatprep.subr.mxu0 0.0
          %3214 = vmatpush1.msra.mxu0 %v3187
          %3215 = vmatprep.subr.mxu0 0.0
          %3216 = vmatpush1.msra.mxu0 %v3188
          %3217 = vmatprep.subr.mxu0 0.0
          %3218 = vmatpush1.msra.mxu0 %v3189
          %3219 = vmatprep.subr.mxu0 0.0
          %3220 = vmatpush1.msra.mxu0 %v3190
          %3221 = vmatprep.subr.mxu0 0.0
          %3222 = vmatpush1.msra.mxu0 %v3191
          %3223 = vmatprep.subr.mxu0 0.0
          %3224 = vmatpush1.msra.mxu0 %v3192
          %3225 = vmatprep.subr.mxu0 0.0
          %3226 = vmatpush1.msra.mxu0 %v3193
          %3227 = vmatprep.subr.mxu0 0.0
          %3228 = vmatpush1.msra.mxu0 %v3194
          %3229 = vmatprep.subr.mxu0 0.0
          %3230 = vmatpush1.msra.mxu0 %v3195
          %3231 = vmatprep.subr.mxu0 0.0
          %3232 = vmatpush1.msra.mxu0 %v3196
          %3233 = vmatprep.subr.mxu0 0.0
          %3234 = vmatpush1.msra.mxu0 %v3197
          %3235 = vmatprep.subr.mxu0 0.0
          %3236 = vmatpush1.msra.mxu0 %v3198
          %3237 = vmatprep.subr.mxu0 0.0
          %3238 = vmatpush1.msra.mxu0 %v3199
          %3239 = vmatprep.subr.mxu0 0.0
          %3240 = vmatpush1.msra.mxu0 0.0
          %3241 = vmatprep.subr.mxu0 0.0
          %3242 = vmatpush1.msra.mxu0 0.0
          %3243 = vmatprep.subr.mxu0 0.0
          %3244 = vmatpush1.msra.mxu0 0.0
          %3245 = vmatprep.subr.mxu0 0.0
          %3246 = vmatpush1.msra.mxu0 0.0
          %3247 = vmatprep.subr.mxu0 0.0
          %3248 = vmatpush1.msra.mxu0 0.0
          %3249 = vmatprep.subr.mxu0 0.0
          %3250 = vmatpush1.msra.mxu0 0.0
          %3251 = vmatprep.subr.mxu0 0.0
          %3252 = vmatpush1.msra.mxu0 0.0
          %3253 = vmatprep.subr.mxu0 0.0
          %3254 = vmatpush1.msra.mxu0 0.0
          %3255 = vmatprep.subr.mxu0 0.0
          %3256 = vmatpush1.msra.mxu0 0.0
          %3257 = vmatprep.subr.mxu0 0.0
          %3258 = vmatpush1.msra.mxu0 0.0
          %3259 = vmatprep.subr.mxu0 0.0
          %3260 = vmatpush1.msra.mxu0 0.0
          %3261 = vmatprep.subr.mxu0 0.0
          %3262 = vmatpush1.msra.mxu0 0.0
          %3263 = vmatprep.subr.mxu0 0.0
          %3264 = vmatpush1.msra.mxu0 0.0
          %3265 = vmatprep.subr.mxu0 0.0
          %3266 = vmatpush1.msra.mxu0 0.0
          %3267 = vmatprep.subr.mxu0 0.0
          %3268 = vmatpush1.msra.mxu0 0.0
          %3269 = vmatprep.subr.mxu0 0.0
          %3270 = vmatpush1.msra.mxu0 0.0
          %3271 = vmatprep.mubr.f32.mxu0 0.0
          %3272 = vmatmul.mubr.f32.gmra.mrb[0].mxu0 %v3183
          %v3273 = vpop.f32.mrb[0].mxu0
          %v3274 = vadd.f32 %v3205, %v3273
          %v3275 = vpop.f32.mrb[0].mxu0
          %3276 = vdwg.mxu0
          %v3277 = vmax.f32 %v3274, 0.0
          %v3278 = vld [vmem:[%s5] sm:$0xff]
          %v3279 = vld [vmem:[%s5 + $0x8] sm:$0xff]
          %v3280 = vld [vmem:[%s5 + $0x10] sm:$0xff]
          %v3281 = vld [vmem:[%s5 + $0x18] sm:$0xff]
          %v3282 = vld [vmem:[%s5 + $0x20] sm:$0xff]
          %v3283 = vld [vmem:[%s5 + $0x28] sm:$0xff]
          %v3284 = vld [vmem:[%s5 + $0x30] sm:$0xff]
          %v3285 = vld [vmem:[%s5 + $0x38] sm:$0xff]
          %v3286 = vld [vmem:[#allocation8] sm:$0x1]
          %v3288 = vlaneseq
          %v3289 = vshrl.u32 %v3288, 7
          %v3290 = vsub.s32 0, %v3289
          %v3291 = vrot.slane %v3286, %v3290
          %vm3293 = vcmask 523264
          %v3295 = vsel %vm3293, %v3277, 0
          %3297 = vmatprep.subr.mxu0 0.0
          %3298 = vmatpush1.msra.mxu0 %v3278
          %3299 = vmatprep.subr.mxu0 0.0
          %3300 = vmatpush1.msra.mxu0 %v3279
          %3301 = vmatprep.subr.mxu0 0.0
          %3302 = vmatpush1.msra.mxu0 %v3280
          %3303 = vmatprep.subr.mxu0 0.0
          %3304 = vmatpush1.msra.mxu0 %v3281
          %3305 = vmatprep.subr.mxu0 0.0
          %3306 = vmatpush1.msra.mxu0 %v3282
          %3307 = vmatprep.subr.mxu0 0.0
          %3308 = vmatpush1.msra.mxu0 %v3283
          %3309 = vmatprep.subr.mxu0 0.0
          %3310 = vmatpush1.msra.mxu0 %v3284
          %3311 = vmatprep.subr.mxu0 0.0
          %3312 = vmatpush1.msra.mxu0 %v3285
          %3313 = vmatprep.subr.mxu0 0.0
          %3314 = vmatpush1.msra.mxu0 0.0
          %3315 = vmatprep.subr.mxu0 0.0
          %3316 = vmatpush1.msra.mxu0 0.0
          %3317 = vmatprep.subr.mxu0 0.0
          %3318 = vmatpush1.msra.mxu0 0.0
          %3319 = vmatprep.subr.mxu0 0.0
          %3320 = vmatpush1.msra.mxu0 0.0
          %3321 = vmatprep.subr.mxu0 0.0
          %3322 = vmatpush1.msra.mxu0 0.0
          %3323 = vmatprep.subr.mxu0 0.0
          %3324 = vmatpush1.msra.mxu0 0.0
          %3325 = vmatprep.subr.mxu0 0.0
          %3326 = vmatpush1.msra.mxu0 0.0
          %3327 = vmatprep.subr.mxu0 0.0
          %3328 = vmatpush1.msra.mxu0 0.0
          %3329 = vmatprep.subr.mxu0 0.0
          %3330 = vmatpush1.msra.mxu0 0.0
          %3331 = vmatprep.subr.mxu0 0.0
          %3332 = vmatpush1.msra.mxu0 0.0
          %3333 = vmatprep.subr.mxu0 0.0
          %3334 = vmatpush1.msra.mxu0 0.0
          %3335 = vmatprep.subr.mxu0 0.0
          %3336 = vmatpush1.msra.mxu0 0.0
          %3337 = vmatprep.subr.mxu0 0.0
          %3338 = vmatpush1.msra.mxu0 0.0
          %3339 = vmatprep.subr.mxu0 0.0
          %3340 = vmatpush1.msra.mxu0 0.0
          %3341 = vmatprep.subr.mxu0 0.0
          %3342 = vmatpush1.msra.mxu0 0.0
          %3343 = vmatprep.subr.mxu0 0.0
          %3344 = vmatpush1.msra.mxu0 0.0
          %3345 = vmatprep.subr.mxu0 0.0
          %3346 = vmatpush1.msra.mxu0 0.0
          %3347 = vmatprep.subr.mxu0 0.0
          %3348 = vmatpush1.msra.mxu0 0.0
          %3349 = vmatprep.subr.mxu0 0.0
          %3350 = vmatpush1.msra.mxu0 0.0
          %3351 = vmatprep.subr.mxu0 0.0
          %3352 = vmatpush1.msra.mxu0 0.0
          %3353 = vmatprep.subr.mxu0 0.0
          %3354 = vmatpush1.msra.mxu0 0.0
          %3355 = vmatprep.subr.mxu0 0.0
          %3356 = vmatpush1.msra.mxu0 0.0
          %3357 = vmatprep.subr.mxu0 0.0
          %3358 = vmatpush1.msra.mxu0 0.0
          %3359 = vmatprep.subr.mxu0 0.0
          %3360 = vmatpush1.msra.mxu0 0.0
          %3361 = vmatprep.mubr.f32.mxu0 0.0
          %3362 = vmatmul.mubr.f32.gmra.mrb[0].mxu0 %v3295
          %v3363 = vpop.f32.mrb[0].mxu0
          %v3364 = vadd.f32 %v3291, %v3363
          %v3365 = vpop.f32.mrb[0].mxu0
          %3366 = vdwg.mxu0
          %v3367 = vmax.f32 %v3364, 0.0
          %vm3368 = vcmask 130048
          %3369 = vst.msk [vmem:[%s7] sm:$0xff] %vm3368, %v3367
        $region72: #{model_forward.1} parent=47 // pred_fallthru
          _
        // Predicated region
        $region73: #{model_forward.1} parent=47 // pred_check
          %p3370 = pneg %p193
        $region74: #{model_forward.1} parent=47 // pred_check_branch
          %3372 = sbr.rel (%p3370) target = $region76
        $region75: #{model_forward.1} parent=47 // pred_region
          _
        $region76: #{model_forward.1} parent=47 // pred_fallthru
          _
        // Predicated region
        $region77: #{model_forward.1} parent=47 // pred_check
          %p3373 = pneg %p193
        $region78: #{model_forward.1} parent=47 // pred_check_branch
          %3375 = sbr.rel (%p3373) target = $region80
        $region79: #{model_forward.1} parent=47 // pred_region
          _
        $region80: #{model_forward.1} parent=47 // pred_fallthru
          _
      $region48: #{model_forward.1} parent=5 // pred_fallthru
        _
      %p3376 = scmp.le.s32.totalorder 2, %s18
      // Predicated region
      $region81: #{model_forward.1} parent=5 // pred_check
        %p3377 = pneg %p3376
      $region82: #{model_forward.1} parent=5 // pred_check_branch
        %3379 = sbr.rel (%p3377) target = $region84
      $region83: #{model_forward.1} parent=5 // pred_region
        %s3380 = ssub.s32 %s18, 2
      $region84: #{model_forward.1} parent=5 // pred_fallthru
        _
    $region6: #{model_forward.1} parent=1 // loop_footer
      %s22 = sadd.s32 1, %s18
    $region7: #{model_forward.1} parent=1 // loop_footer_branch
      %17 = sbr.rel target = $region3
    $region8: #{model_forward.1} parent=1 // loop_exit
      _
    %3381 = vsyncpa [#allocation4], 1
    %s3382 = scalar_lea.sflag [#allocation4], 1
    %3383 = vsyncpa %s3382, 1
    %3384 = vsyncpa [#allocation6], 1
    %3385 = vsyncpa [#allocation9], 1

</llo_original>
